<compile_context>
chip_gen: v7x
topology: tpu7x:2x2x1
jax: 0.10.0
libtpu: 0.0.40
codegen_flags: <defaults>
</compile_context>

<pallas_src>
import math

import jax
import jax.numpy as jnp
from jax.experimental import pallas as pl
from jax.experimental.pallas import tpu as pltpu

# ----------------------------- config ---------------------------------------
BATCH = 16           # number of graphs / feature sets
GRAPH_TILE = 8       # graphs packed per grid step (block-diag aggregation)
N_NODES = 8          # number of graph nodes per graph
IN_FEATS = 16        # in_features  (logical)
HIDDEN = 32          # hidden_features (logical)
OUT_FEATS = 8        # out_features (logical)
DEPTH = 3            # depth
ALPHA = 0.1          # GCNII alpha (initial-residual mixing)
LAMBDA = 1.0         # GCNII lambda (identity-mapping strength)

# lane-dense padded dims (multiples of 128)
IN_PAD = 128
H_PAD = 128
OUT_PAD = 128

ROWS = GRAPH_TILE * N_NODES      # node rows per grid step (64)
CHUNKS = BATCH // GRAPH_TILE     # grid steps (2)


# ----------------------------- kernel ---------------------------------------
def sequential_ii_kernel(adj_ref, h_ref, w_in_ref, b_in_ref,
                         w_eff_ref, w_out_ref, b_out_ref, o_ref):
    """Fused forward for one chunk of GRAPH_TILE graphs.

    adj_ref   : [ROWS, ROWS]          bf16, block-diag (1-alpha)*D^-1/2(A+I)D^-1/2
    h_ref     : [ROWS, IN_PAD]        bf16, stacked node features (zero-padded)
    w_in_ref  : [IN_PAD, H_PAD]       bf16, fc_in weight (x@W layout, padded)
    b_in_ref  : [1, H_PAD]            f32,  fc_in bias (padded)
    w_eff_ref : [DEPTH, H_PAD, H_PAD] bf16, (1-beta_l) I + beta_l W_l (padded)
    w_out_ref : [H_PAD, OUT_PAD]      bf16, fc_out weight (padded)
    b_out_ref : [1, OUT_PAD]          f32,  fc_out bias (padded)
    o_ref     : [ROWS, OUT_PAD]       f32,  output (padded, lane-dense store)
    """
    bf16 = jnp.bfloat16

    # h = self.fc_in(h)   (bf16 operands, f32 accumulate)
    h = jnp.dot(h_ref[...], w_in_ref[...],
                preferred_element_type=jnp.float32) + b_in_ref[...]

    # hoist the residual term: alpha * h0 (computed once, f32)
    ah0 = ALPHA * h

    # for layer in self.layers: h = layer(g, h, h0)
    # (1 - alpha) is pre-folded into adj_ref at build time.
    for l in range(DEPTH):  # static unroll — DEPTH is a compile-time constant
        agg = jnp.dot(adj_ref[...], h.astype(bf16),
                      preferred_element_type=jnp.float32)
        mix = agg + ah0
        h = jnp.maximum(
            jnp.dot(mix.astype(bf16), w_eff_ref[l],
                    preferred_element_type=jnp.float32), 0.0)

    # h = self.activation(h) is a ReLU and the last layer already applied one
    # (idempotent), so it is skipped.

    # h = self.fc_out(h)
    o_ref[...] = (jnp.dot(h.astype(bf16), w_out_ref[...],
                          preferred_element_type=jnp.float32)
                  + b_out_ref[...]).astype(o_ref.dtype)


def sequential_ii_forward(adj_bd, h, w_in, b_in, w_eff, w_out, b_out):
    """h: [CHUNKS, ROWS, IN_PAD] (bf16). Returns [CHUNKS, ROWS, OUT_PAD] (f32)."""
    chunks, rows, _ = h.shape
    const2 = lambda c: (0, 0)
    const3 = lambda c: (0, 0, 0)
    return pl.pallas_call(
        sequential_ii_kernel,
        out_shape=jax.ShapeDtypeStruct((chunks, rows, OUT_PAD), jnp.float32),
        grid=(chunks,),
        in_specs=[
            pl.BlockSpec((rows, rows), const2),                    # adj (resident)
            pl.BlockSpec((None, rows, IN_PAD), lambda c: (c, 0, 0)),  # h (per chunk)
            pl.BlockSpec((IN_PAD, H_PAD), const2),                 # w_in (resident)
            pl.BlockSpec((1, H_PAD), const2),                      # b_in (resident)
            pl.BlockSpec((DEPTH, H_PAD, H_PAD), const3),           # w_eff (resident)
            pl.BlockSpec((H_PAD, OUT_PAD), const2),                # w_out (resident)
            pl.BlockSpec((1, OUT_PAD), const2),                    # b_out (resident)
        ],
        out_specs=pl.BlockSpec((None, rows, OUT_PAD), lambda c: (c, 0, 0)),
        compiler_params=pltpu.CompilerParams(
            dimension_semantics=("parallel",)),
    )(adj_bd, h, w_in, b_in, w_eff, w_out, b_out)


# ------------------------ parameter / graph setup (glue) ---------------------
def linear_init(key, fan_in, fan_out):
    """Deterministic torch.nn.Linear-style init, returned in x@W layout."""
    kw, kb = jax.random.split(key)
    bound = 1.0 / math.sqrt(fan_in)
    w = jax.random.uniform(kw, (fan_in, fan_out), jnp.float32, -bound, bound)
    b = jax.random.uniform(kb, (1, fan_out), jnp.float32, -bound, bound)
    return w, b


def build_normalized_adj(n_nodes, src, dst):
    """Dense D^-1/2 (A + I) D^-1/2 (symmetric GCN normalization)."""
    a = jnp.zeros((n_nodes, n_nodes), jnp.float32)
    a = a.at[src, dst].set(1.0)
    a = a.at[dst, src].set(1.0)          # treat as undirected for aggregation
    a = a + jnp.eye(n_nodes, dtype=jnp.float32)   # self loops
    deg = jnp.sum(a, axis=1)
    d_inv_sqrt = 1.0 / jnp.sqrt(deg)
    return a * d_inv_sqrt[:, None] * d_inv_sqrt[None, :]


def pad_to(x, shape):
    pads = [(0, s - d) for d, s in zip(x.shape, shape)]
    return jnp.pad(x, pads)


if __name__ == "__main__":
    key = jax.random.PRNGKey(0)
    k_h, k_in, k_out, *k_layers = jax.random.split(key, 3 + DEPTH)

    # deterministic small graph (ring + a chord) on N_NODES nodes
    src = jnp.array([0, 1, 2, 3, 4, 5, 6, 7, 0], dtype=jnp.int32)
    dst = jnp.array([1, 2, 3, 4, 5, 6, 7, 0, 4], dtype=jnp.int32)
    adj = build_normalized_adj(N_NODES, src, dst)
    # fold (1 - alpha) into the constant adjacency
    adj_scaled = (1.0 - ALPHA) * adj
    # block-diagonal adjacency over the GRAPH_TILE graphs packed per grid step
    adj_bd = jnp.kron(jnp.eye(GRAPH_TILE, dtype=jnp.float32), adj_scaled)
    adj_bd_bf = adj_bd.astype(jnp.bfloat16)

    # batched node features (same graph structure, BATCH feature sets)
    h = jax.random.normal(k_h, (BATCH, N_NODES, IN_FEATS), jnp.float32)

    # fc_in / fc_out
    w_in, b_in = linear_init(k_in, IN_FEATS, HIDDEN)
    w_out, b_out = linear_init(k_out, HIDDEN, OUT_FEATS)

    # per-layer GCNII weights folded with identity mapping:
    #   W_eff[l] = (1 - beta_l) * I + beta_l * W_l,  beta_l = log(lambda/l + 1)
    eye = jnp.eye(HIDDEN, dtype=jnp.float32)
    w_eff_list = []
    for idx in range(DEPTH):
        layer_id = idx + 1                      # `layer=idx + 1` in __init__
        beta = math.log(LAMBDA / layer_id + 1.0)
        w_l, _ = linear_init(k_layers[idx], HIDDEN, HIDDEN)
        w_eff_list.append((1.0 - beta) * eye + beta * w_l)
    w_eff = jnp.stack(w_eff_list, axis=0)       # [DEPTH, H, H]

    # zero-pad feature dims to 128 lanes; cast matmul operands to bf16
    h_pad = pad_to(h, (BATCH, N_NODES, IN_PAD)).astype(jnp.bfloat16)
    h_chunks = h_pad.reshape(CHUNKS, ROWS, IN_PAD)           # pack graphs per chunk
    w_in_p = pad_to(w_in, (IN_PAD, H_PAD)).astype(jnp.bfloat16)
    b_in_p = pad_to(b_in, (1, H_PAD))                        # f32
    w_eff_p = pad_to(w_eff, (DEPTH, H_PAD, H_PAD)).astype(jnp.bfloat16)
    w_out_p = pad_to(w_out, (H_PAD, OUT_PAD)).astype(jnp.bfloat16)
    b_out_p = pad_to(b_out, (1, OUT_PAD))                    # f32

    out_pad = sequential_ii_forward(adj_bd_bf, h_chunks, w_in_p, b_in_p,
                                    w_eff_p, w_out_p, b_out_p)
    out_pad = jax.block_until_ready(out_pad)
    out = out_pad.reshape(BATCH, N_NODES, OUT_PAD)[..., :OUT_FEATS]

    # pure-JAX reference with identical bf16-operand / f32-accumulate math
    f32 = lambda x: x.astype(jnp.float32)
    bf = jnp.bfloat16
    adj_f = f32(adj_scaled.astype(bf))                       # [N, N]
    h_ref = jnp.einsum('bnd,dh->bnh', f32(h_pad), f32(w_in_p)) + b_in_p
    ah0_ref = ALPHA * h_ref
    for l in range(DEPTH):
        agg = jnp.einsum('ij,bjh->bih', adj_f, f32(h_ref.astype(bf)))
        mix = agg + ah0_ref
        h_ref = jnp.maximum(
            jnp.einsum('bnh,hk->bnk', f32(mix.astype(bf)), f32(w_eff_p[l])), 0.0)
    ref = (jnp.einsum('bnh,ho->bno', f32(h_ref.astype(bf)), f32(w_out_p))
           + b_out_p)[..., :OUT_FEATS]

    assert out.shape == (BATCH, N_NODES, OUT_FEATS)
    assert jnp.allclose(out, ref, atol=1e-2, rtol=1e-2)

    print("KERNEL_OK")
</pallas_src>

<mosaic_0001>
module attributes {stable_mosaic.version = 11 : i64} {
  func.func @sequential_ii_kernel(%arg0: i32, %arg1: memref<64x64xbf16, #tpu.memory_space<vmem>>, %arg2: memref<1x64x128xbf16, #tpu.memory_space<vmem>>, %arg3: memref<128x128xbf16, #tpu.memory_space<vmem>>, %arg4: memref<1x128xf32, #tpu.memory_space<vmem>>, %arg5: memref<3x128x128xbf16, #tpu.memory_space<vmem>>, %arg6: memref<128x128xbf16, #tpu.memory_space<vmem>>, %arg7: memref<1x128xf32, #tpu.memory_space<vmem>>, %arg8: memref<1x64x128xf32, #tpu.memory_space<vmem>>) attributes {dimension_semantics = [#tpu.dimension_semantics<parallel>], iteration_bounds = array<i64: 2>, scalar_prefetch = 0 : i64, scratch_operands = 0 : i64, tpu.core_type = #tpu.core_type<tc>, window_params = [{pipeline_mode = #tpu.pipeline_mode<synchronous>, transform_indices = @transform_0, window_bounds = array<i64: 64, 64>}, {transform_indices = @transform_1, window_bounds = array<i64: 1, 64, 128>}, {pipeline_mode = #tpu.pipeline_mode<synchronous>, transform_indices = @transform_2, window_bounds = array<i64: 128, 128>}, {pipeline_mode = #tpu.pipeline_mode<synchronous>, transform_indices = @transform_3, window_bounds = array<i64: 1, 128>}, {pipeline_mode = #tpu.pipeline_mode<synchronous>, transform_indices = @transform_4, window_bounds = array<i64: 3, 128, 128>}, {pipeline_mode = #tpu.pipeline_mode<synchronous>, transform_indices = @transform_5, window_bounds = array<i64: 128, 128>}, {pipeline_mode = #tpu.pipeline_mode<synchronous>, transform_indices = @transform_6, window_bounds = array<i64: 1, 128>}, {transform_indices = @transform_7, window_bounds = array<i64: 1, 64, 128>}]} {
    %c0 = arith.constant 0 : index
    %c0_0 = arith.constant 0 : index
    %c0_1 = arith.constant 0 : index
    %0 = vector.load %arg2[%c0, %c0_0, %c0_1] : memref<1x64x128xbf16, #tpu.memory_space<vmem>>, vector<1x64x128xbf16>
    %1 = vector.shape_cast %0 : vector<1x64x128xbf16> to vector<64x128xbf16>
    %c0_2 = arith.constant 0 : index
    %c0_3 = arith.constant 0 : index
    %2 = vector.load %arg3[%c0_2, %c0_3] : memref<128x128xbf16, #tpu.memory_space<vmem>>, vector<128x128xbf16>
    %cst = arith.constant dense<0.000000e+00> : vector<64x128xf32>
    %3 = tpu.matmul %1, %2, %cst {dimension_numbers = #tpu.dot_dimension_numbers<[1], [0], [0], [1], [0, 0, 1, 1], [], []>} : vector<64x128xbf16>, vector<128x128xbf16>, vector<64x128xf32> -> vector<64x128xf32>
    %c0_4 = arith.constant 0 : index
    %c0_5 = arith.constant 0 : index
    %4 = vector.load %arg4[%c0_4, %c0_5] : memref<1x128xf32, #tpu.memory_space<vmem>>, vector<1x128xf32>
    %5 = vector.broadcast %4 : vector<1x128xf32> to vector<64x128xf32>
    %6 = arith.addf %3, %5 : vector<64x128xf32>
    %cst_6 = arith.constant 1.000000e-01 : f32
    %7 = vector.broadcast %cst_6 : f32 to vector<64x128xf32>
    %8 = arith.mulf %7, %6 : vector<64x128xf32>
    %c0_7 = arith.constant 0 : index
    %c0_8 = arith.constant 0 : index
    %9 = vector.load %arg1[%c0_7, %c0_8] : memref<64x64xbf16, #tpu.memory_space<vmem>>, vector<64x64xbf16>
    %10 = arith.truncf %6 : vector<64x128xf32> to vector<64x128xbf16>
    %cst_9 = arith.constant dense<0.000000e+00> : vector<64x128xf32>
    %11 = tpu.matmul %9, %10, %cst_9 {dimension_numbers = #tpu.dot_dimension_numbers<[1], [0], [0], [1], [0, 0, 1, 1], [], []>} : vector<64x64xbf16>, vector<64x128xbf16>, vector<64x128xf32> -> vector<64x128xf32>
    %12 = arith.addf %11, %8 : vector<64x128xf32>
    %13 = arith.truncf %12 : vector<64x128xf32> to vector<64x128xbf16>
    %c0_10 = arith.constant 0 : index
    %c0_11 = arith.constant 0 : index
    %c0_12 = arith.constant 0 : index
    %14 = vector.load %arg5[%c0_10, %c0_11, %c0_12] : memref<3x128x128xbf16, #tpu.memory_space<vmem>>, vector<1x128x128xbf16>
    %15 = vector.shape_cast %14 : vector<1x128x128xbf16> to vector<128x128xbf16>
    %cst_13 = arith.constant dense<0.000000e+00> : vector<64x128xf32>
    %16 = tpu.matmul %13, %15, %cst_13 {dimension_numbers = #tpu.dot_dimension_numbers<[1], [0], [0], [1], [0, 0, 1, 1], [], []>} : vector<64x128xbf16>, vector<128x128xbf16>, vector<64x128xf32> -> vector<64x128xf32>
    %cst_14 = arith.constant 0.000000e+00 : f32
    %17 = vector.broadcast %cst_14 : f32 to vector<64x128xf32>
    %18 = arith.maximumf %16, %17 : vector<64x128xf32>
    %c0_15 = arith.constant 0 : index
    %c0_16 = arith.constant 0 : index
    %19 = vector.load %arg1[%c0_15, %c0_16] : memref<64x64xbf16, #tpu.memory_space<vmem>>, vector<64x64xbf16>
    %20 = arith.truncf %18 : vector<64x128xf32> to vector<64x128xbf16>
    %cst_17 = arith.constant dense<0.000000e+00> : vector<64x128xf32>
    %21 = tpu.matmul %19, %20, %cst_17 {dimension_numbers = #tpu.dot_dimension_numbers<[1], [0], [0], [1], [0, 0, 1, 1], [], []>} : vector<64x64xbf16>, vector<64x128xbf16>, vector<64x128xf32> -> vector<64x128xf32>
    %22 = arith.addf %21, %8 : vector<64x128xf32>
    %23 = arith.truncf %22 : vector<64x128xf32> to vector<64x128xbf16>
    %c1 = arith.constant 1 : index
    %c0_18 = arith.constant 0 : index
    %c0_19 = arith.constant 0 : index
    %24 = vector.load %arg5[%c1, %c0_18, %c0_19] : memref<3x128x128xbf16, #tpu.memory_space<vmem>>, vector<1x128x128xbf16>
    %25 = vector.shape_cast %24 : vector<1x128x128xbf16> to vector<128x128xbf16>
    %cst_20 = arith.constant dense<0.000000e+00> : vector<64x128xf32>
    %26 = tpu.matmul %23, %25, %cst_20 {dimension_numbers = #tpu.dot_dimension_numbers<[1], [0], [0], [1], [0, 0, 1, 1], [], []>} : vector<64x128xbf16>, vector<128x128xbf16>, vector<64x128xf32> -> vector<64x128xf32>
    %cst_21 = arith.constant 0.000000e+00 : f32
    %27 = vector.broadcast %cst_21 : f32 to vector<64x128xf32>
    %28 = arith.maximumf %26, %27 : vector<64x128xf32>
    %c0_22 = arith.constant 0 : index
    %c0_23 = arith.constant 0 : index
    %29 = vector.load %arg1[%c0_22, %c0_23] : memref<64x64xbf16, #tpu.memory_space<vmem>>, vector<64x64xbf16>
    %30 = arith.truncf %28 : vector<64x128xf32> to vector<64x128xbf16>
    %cst_24 = arith.constant dense<0.000000e+00> : vector<64x128xf32>
    %31 = tpu.matmul %29, %30, %cst_24 {dimension_numbers = #tpu.dot_dimension_numbers<[1], [0], [0], [1], [0, 0, 1, 1], [], []>} : vector<64x64xbf16>, vector<64x128xbf16>, vector<64x128xf32> -> vector<64x128xf32>
    %32 = arith.addf %31, %8 : vector<64x128xf32>
    %33 = arith.truncf %32 : vector<64x128xf32> to vector<64x128xbf16>
    %c2 = arith.constant 2 : index
    %c0_25 = arith.constant 0 : index
    %c0_26 = arith.constant 0 : index
    %34 = vector.load %arg5[%c2, %c0_25, %c0_26] : memref<3x128x128xbf16, #tpu.memory_space<vmem>>, vector<1x128x128xbf16>
    %35 = vector.shape_cast %34 : vector<1x128x128xbf16> to vector<128x128xbf16>
    %cst_27 = arith.constant dense<0.000000e+00> : vector<64x128xf32>
    %36 = tpu.matmul %33, %35, %cst_27 {dimension_numbers = #tpu.dot_dimension_numbers<[1], [0], [0], [1], [0, 0, 1, 1], [], []>} : vector<64x128xbf16>, vector<128x128xbf16>, vector<64x128xf32> -> vector<64x128xf32>
    %cst_28 = arith.constant 0.000000e+00 : f32
    %37 = vector.broadcast %cst_28 : f32 to vector<64x128xf32>
    %38 = arith.maximumf %36, %37 : vector<64x128xf32>
    %39 = arith.truncf %38 : vector<64x128xf32> to vector<64x128xbf16>
    %c0_29 = arith.constant 0 : index
    %c0_30 = arith.constant 0 : index
    %40 = vector.load %arg6[%c0_29, %c0_30] : memref<128x128xbf16, #tpu.memory_space<vmem>>, vector<128x128xbf16>
    %cst_31 = arith.constant dense<0.000000e+00> : vector<64x128xf32>
    %41 = tpu.matmul %39, %40, %cst_31 {dimension_numbers = #tpu.dot_dimension_numbers<[1], [0], [0], [1], [0, 0, 1, 1], [], []>} : vector<64x128xbf16>, vector<128x128xbf16>, vector<64x128xf32> -> vector<64x128xf32>
    %c0_32 = arith.constant 0 : index
    %c0_33 = arith.constant 0 : index
    %42 = vector.load %arg7[%c0_32, %c0_33] : memref<1x128xf32, #tpu.memory_space<vmem>>, vector<1x128xf32>
    %43 = vector.broadcast %42 : vector<1x128xf32> to vector<64x128xf32>
    %44 = arith.addf %41, %43 : vector<64x128xf32>
    %c0_34 = arith.constant 0 : index
    %c0_35 = arith.constant 0 : index
    %c0_36 = arith.constant 0 : index
    %45 = vector.load %arg8[%c0_34, %c0_35, %c0_36] : memref<1x64x128xf32, #tpu.memory_space<vmem>>, vector<1x64x128xf32>
    %46 = vector.shape_cast %45 : vector<1x64x128xf32> to vector<64x128xf32>
    %47 = vector.shape_cast %44 : vector<64x128xf32> to vector<1x64x128xf32>
    tpu.vector_store %arg8[%c0_34, %c0_35, %c0_36], %47 {strides = array<i32>} : memref<1x64x128xf32, #tpu.memory_space<vmem>>, vector<1x64x128xf32>,
    return
  }
  func.func @transform_0(%arg0: i32) -> (i32, i32) {
    %c0_i32 = arith.constant 0 : i32
    %c0_i32_0 = arith.constant 0 : i32
    %c0_i32_1 = arith.constant 0 : i32
    return %c0_i32, %c0_i32_0 : i32, i32
  }
  func.func @transform_1(%arg0: i32) -> (i32, i32, i32) {
    %c0_i32 = arith.constant 0 : i32
    %c0_i32_0 = arith.constant 0 : i32
    %c0_i32_1 = arith.constant 0 : i32
    return %arg0, %c0_i32, %c0_i32_0 : i32, i32, i32
  }
  func.func @transform_2(%arg0: i32) -> (i32, i32) {
    %c0_i32 = arith.constant 0 : i32
    %c0_i32_0 = arith.constant 0 : i32
    %c0_i32_1 = arith.constant 0 : i32
    return %c0_i32, %c0_i32_0 : i32, i32
  }
  func.func @transform_3(%arg0: i32) -> (i32, i32) {
    %c0_i32 = arith.constant 0 : i32
    %c0_i32_0 = arith.constant 0 : i32
    %c0_i32_1 = arith.constant 0 : i32
    return %c0_i32, %c0_i32_0 : i32, i32
  }
  func.func @transform_4(%arg0: i32) -> (i32, i32, i32) {
    %c0_i32 = arith.constant 0 : i32
    %c0_i32_0 = arith.constant 0 : i32
    %c0_i32_1 = arith.constant 0 : i32
    %c0_i32_2 = arith.constant 0 : i32
    return %c0_i32, %c0_i32_0, %c0_i32_1 : i32, i32, i32
  }
  func.func @transform_5(%arg0: i32) -> (i32, i32) {
    %c0_i32 = arith.constant 0 : i32
    %c0_i32_0 = arith.constant 0 : i32
    %c0_i32_1 = arith.constant 0 : i32
    return %c0_i32, %c0_i32_0 : i32, i32
  }
  func.func @transform_6(%arg0: i32) -> (i32, i32) {
    %c0_i32 = arith.constant 0 : i32
    %c0_i32_0 = arith.constant 0 : i32
    %c0_i32_1 = arith.constant 0 : i32
    return %c0_i32, %c0_i32_0 : i32, i32
  }
  func.func @transform_7(%arg0: i32) -> (i32, i32, i32) {
    %c0_i32 = arith.constant 0 : i32
    %c0_i32_0 = arith.constant 0 : i32
    %c0_i32_1 = arith.constant 0 : i32
    return %arg0, %c0_i32, %c0_i32_0 : i32, i32, i32
  }
}

</mosaic_0001>

<llo_original>
// kernel: tpu_custom_call.1
$region0: #{tpu_custom_call.1}
  #allocation0 [shape = 'u32[]', space=smem, size = 0x4, offset = 0x4, fixed_abs, tag = 'smem constant byte address 0x4 - core index']
  #allocation1 [shape = 'u32[144,128]{1,0:T(1,128)}', space=vmem, size = 0x12000, scoped, tag = 'internal scratch']
  %s0 = inlined_call_operand.hbm [shape: bf16[64,64], index: 0, kind: input, shape index: {}]
  %s1 = inlined_call_operand.hbm [shape: bf16[2,64,128], index: 1, kind: input, shape index: {}]
  %s2 = inlined_call_operand.hbm [shape: bf16[128,128], index: 2, kind: input, shape index: {}]
  %s3 = inlined_call_operand.vmem [shape: f32[1,128], index: 3, kind: input, shape index: {}]
  %s4 = inlined_call_operand.hbm [shape: bf16[3,128,128], index: 4, kind: input, shape index: {}]
  %s5 = inlined_call_operand.hbm [shape: bf16[128,128], index: 5, kind: input, shape index: {}]
  %s6 = inlined_call_operand.vmem [shape: f32[1,128], index: 6, kind: input, shape index: {}]
  %s7 = inlined_call_operand.hbm [shape: f32[2,64,128], index: 7, kind: output, shape index: {}]
  %s8 = sld [smem:[#allocation0]]
  $region81: #{tpu_custom_call.1} parent=0
    _
  %s10 = ssub.s32 1, %s8
  %s11 = scalar_select 0, %s10, %s8
  $region1: #{tpu_custom_call.1} parent=0
    #allocation2 [shape = 'u8[16384]{0}', space=vmem, size = 0x4000, scoped, tag = 'input window, operand 0, single buffered']
    #allocation3 [shape = 's32[2]{0}', space=sflag, size = 0x8, scoped, tag = 'scoped memory for tpu_custom_call.1']
    #allocation4 [shape = 's32[2]{0}', space=sflag, size = 0x8, scoped, tag = 'scoped memory for tpu_custom_call.1']
    #allocation5 [shape = 'u8[32768]{0}', space=vmem, size = 0x8000, scoped, tag = 'input window, operand 1']
    #allocation6 [shape = 's32[2]{0}', space=sflag, size = 0x8, scoped, tag = 'scoped memory for tpu_custom_call.1']
    #allocation7 [shape = 'u8[32768]{0}', space=vmem, size = 0x8000, scoped, tag = 'input window, operand 2, single buffered']
    #allocation8 [shape = 'u8[98304]{0}', space=vmem, size = 0x18000, scoped, tag = 'input window, operand 4, single buffered']
    #allocation9 [shape = 's32[1]{0}', space=sflag, size = 0x4, scoped, tag = 'scoped memory for tpu_custom_call.1']
    #allocation10 [shape = 'u8[32768]{0}', space=vmem, size = 0x8000, scoped, tag = 'input window, operand 5, single buffered']
    #allocation11 [shape = 'u8[65536]{0}', space=vmem, size = 0x10000, scoped, tag = 'output window, operand 0']
    %12 = vsyncpa [#allocation3], 0
    %13 = vsyncpa [#allocation6], 0
    %s14 = scalar_lea.sflag [#allocation6], 1
    %15 = vsyncpa %s14, 0
    %16 = vsyncpa [#allocation9], 0
    %17 = vsyncpa [#allocation4], 0
    %s18 = scalar_lea.sflag [#allocation4], 1
    %19 = vsyncpa %s18, 0
    loop: start=0, step=1, limit=4
    $region2: #{tpu_custom_call.1} parent=1 // loop_pre_header
      _
    $region3: #{tpu_custom_call.1} parent=1 // loop_header
      %s21 = sphi 0, %s25
      %p22 = scmp.ge.s32.totalorder %s21, 4
      %s29 = sphi 0, %s29
      %s31 = sphi 0, %s29
      %s32 = sphi 0, %s31
      %s46 = sphi 0, %s32
      %s52 = sphi 0, %s54
      %s55 = sphi 0, %s52
      %s56 = sphi 0, %s55
      %s72 = sphi 0, %s56
      %s76 = sphi 0, %s76
      %s78 = sphi 0, %s76
      %s79 = sphi 0, %s78
      %s93 = sphi 0, %s79
      %s97 = sphi 0, %s97
      %s99 = sphi 0, %s97
      %s100 = sphi 0, %s99
      %s114 = sphi 0, %s100
      %s118 = sphi 0, %s118
      %s120 = sphi 0, %s118
      %s121 = sphi 0, %s120
      %s135 = sphi 0, %s121
      %s139 = sphi 0, %s139
      %s141 = sphi 0, %s139
      %s142 = sphi 0, %s141
      %s156 = sphi 0, %s142
      %s160 = sphi 0, %s160
      %s162 = sphi 0, %s160
      %s163 = sphi 0, %s162
      %s177 = sphi 0, %s163
      %s183 = sphi 0, %s185
      %s186 = sphi 0, %s183
      %s187 = sphi 0, %s186
      %s203 = sphi 0, %s187
    $region4: #{tpu_custom_call.1} parent=1 // loop_header_branch
      %24 = sbr.rel (%p22) target = $region8
    $region5: #{tpu_custom_call.1} parent=1 // loop_body
      %s26 = ssub.s32 %s21, 1
      %s27 = ssub.s32 %s21, 2
      %s28 = sadd.s32 %s21, 1
      %s30 = sadd.s32 %s29, 1
      %p33 = scmp.eq.s32.totalorder %s21, 1
      %p34 = scmp.ne.s32.totalorder %s29, %s31
      %p35 = scmp.eq.s32.totalorder %s21, 0
      %p36 = por %p34, %p35
      %p37 = scmp.ne.s32.totalorder %s29, %s31
      %p38 = scmp.eq.s32.totalorder %s26, 1
      %p39 = por %p37, %p38
      %p40 = scmp.ne.s32.totalorder %s31, %s32
      %p41 = scmp.eq.s32.totalorder %s26, 0
      %p42 = por %p40, %p41
      %p43 = scmp.ne.s32.totalorder %s31, %s32
      %p44 = scmp.eq.s32.totalorder %s27, 1
      %p45 = por %p43, %p44
      %p47 = scmp.ne.s32.totalorder %s32, %s46
      %p48 = scmp.eq.s32.totalorder %s27, 0
      %p49 = por %p47, %p48
      %s50 = ssub.s32 %s21, %s28
      %p51 = scmp.eq.s32.totalorder %s50, 0
      %s53 = sadd.s32 %s52, 1
      %s54 = scalar_select %p51, %s52, %s53
      %p57 = pneg %p51
      %p58 = scmp.eq.s32.totalorder %s21, 1
      %p59 = por %p57, %p58
      %p60 = scmp.ne.s32.totalorder %s52, %s55
      %p61 = scmp.eq.s32.totalorder %s21, 0
      %p62 = por %p60, %p61
      %p63 = scmp.ne.s32.totalorder %s52, %s55
      %p64 = scmp.eq.s32.totalorder %s26, 1
      %p65 = por %p63, %p64
      %p66 = scmp.ne.s32.totalorder %s55, %s56
      %p67 = scmp.eq.s32.totalorder %s26, 0
      %p68 = por %p66, %p67
      %p69 = scmp.ne.s32.totalorder %s55, %s56
      %p70 = scmp.eq.s32.totalorder %s27, 1
      %p71 = por %p69, %p70
      %p73 = scmp.ne.s32.totalorder %s56, %s72
      %p74 = scmp.eq.s32.totalorder %s27, 0
      %p75 = por %p73, %p74
      %s77 = sadd.s32 %s76, 1
      %p80 = scmp.eq.s32.totalorder %s21, 1
      %p81 = scmp.ne.s32.totalorder %s76, %s78
      %p82 = scmp.eq.s32.totalorder %s21, 0
      %p83 = por %p81, %p82
      %p84 = scmp.ne.s32.totalorder %s76, %s78
      %p85 = scmp.eq.s32.totalorder %s26, 1
      %p86 = por %p84, %p85
      %p87 = scmp.ne.s32.totalorder %s78, %s79
      %p88 = scmp.eq.s32.totalorder %s26, 0
      %p89 = por %p87, %p88
      %p90 = scmp.ne.s32.totalorder %s78, %s79
      %p91 = scmp.eq.s32.totalorder %s27, 1
      %p92 = por %p90, %p91
      %p94 = scmp.ne.s32.totalorder %s79, %s93
      %p95 = scmp.eq.s32.totalorder %s27, 0
      %p96 = por %p94, %p95
      %s98 = sadd.s32 %s97, 1
      %p101 = scmp.eq.s32.totalorder %s21, 1
      %p102 = scmp.ne.s32.totalorder %s97, %s99
      %p103 = scmp.eq.s32.totalorder %s21, 0
      %p104 = por %p102, %p103
      %p105 = scmp.ne.s32.totalorder %s97, %s99
      %p106 = scmp.eq.s32.totalorder %s26, 1
      %p107 = por %p105, %p106
      %p108 = scmp.ne.s32.totalorder %s99, %s100
      %p109 = scmp.eq.s32.totalorder %s26, 0
      %p110 = por %p108, %p109
      %p111 = scmp.ne.s32.totalorder %s99, %s100
      %p112 = scmp.eq.s32.totalorder %s27, 1
      %p113 = por %p111, %p112
      %p115 = scmp.ne.s32.totalorder %s100, %s114
      %p116 = scmp.eq.s32.totalorder %s27, 0
      %p117 = por %p115, %p116
      %s119 = sadd.s32 %s118, 1
      %p122 = scmp.eq.s32.totalorder %s21, 1
      %p123 = scmp.ne.s32.totalorder %s118, %s120
      %p124 = scmp.eq.s32.totalorder %s21, 0
      %p125 = por %p123, %p124
      %p126 = scmp.ne.s32.totalorder %s118, %s120
      %p127 = scmp.eq.s32.totalorder %s26, 1
      %p128 = por %p126, %p127
      %p129 = scmp.ne.s32.totalorder %s120, %s121
      %p130 = scmp.eq.s32.totalorder %s26, 0
      %p131 = por %p129, %p130
      %p132 = scmp.ne.s32.totalorder %s120, %s121
      %p133 = scmp.eq.s32.totalorder %s27, 1
      %p134 = por %p132, %p133
      %p136 = scmp.ne.s32.totalorder %s121, %s135
      %p137 = scmp.eq.s32.totalorder %s27, 0
      %p138 = por %p136, %p137
      %s140 = sadd.s32 %s139, 1
      %p143 = scmp.eq.s32.totalorder %s21, 1
      %p144 = scmp.ne.s32.totalorder %s139, %s141
      %p145 = scmp.eq.s32.totalorder %s21, 0
      %p146 = por %p144, %p145
      %p147 = scmp.ne.s32.totalorder %s139, %s141
      %p148 = scmp.eq.s32.totalorder %s26, 1
      %p149 = por %p147, %p148
      %p150 = scmp.ne.s32.totalorder %s141, %s142
      %p151 = scmp.eq.s32.totalorder %s26, 0
      %p152 = por %p150, %p151
      %p153 = scmp.ne.s32.totalorder %s141, %s142
      %p154 = scmp.eq.s32.totalorder %s27, 1
      %p155 = por %p153, %p154
      %p157 = scmp.ne.s32.totalorder %s142, %s156
      %p158 = scmp.eq.s32.totalorder %s27, 0
      %p159 = por %p157, %p158
      %s161 = sadd.s32 %s160, 1
      %p164 = scmp.eq.s32.totalorder %s21, 1
      %p165 = scmp.ne.s32.totalorder %s160, %s162
      %p166 = scmp.eq.s32.totalorder %s21, 0
      %p167 = por %p165, %p166
      %p168 = scmp.ne.s32.totalorder %s160, %s162
      %p169 = scmp.eq.s32.totalorder %s26, 1
      %p170 = por %p168, %p169
      %p171 = scmp.ne.s32.totalorder %s162, %s163
      %p172 = scmp.eq.s32.totalorder %s26, 0
      %p173 = por %p171, %p172
      %p174 = scmp.ne.s32.totalorder %s162, %s163
      %p175 = scmp.eq.s32.totalorder %s27, 1
      %p176 = por %p174, %p175
      %p178 = scmp.ne.s32.totalorder %s163, %s177
      %p179 = scmp.eq.s32.totalorder %s27, 0
      %p180 = por %p178, %p179
      %s181 = ssub.s32 %s21, %s28
      %p182 = scmp.eq.s32.totalorder %s181, 0
      %s184 = sadd.s32 %s183, 1
      %s185 = scalar_select %p182, %s183, %s184
      %p188 = pneg %p182
      %p189 = scmp.eq.s32.totalorder %s21, 1
      %p190 = por %p188, %p189
      %p191 = scmp.ne.s32.totalorder %s183, %s186
      %p192 = scmp.eq.s32.totalorder %s21, 0
      %p193 = por %p191, %p192
      %p194 = scmp.ne.s32.totalorder %s183, %s186
      %p195 = scmp.eq.s32.totalorder %s26, 1
      %p196 = por %p194, %p195
      %p197 = scmp.ne.s32.totalorder %s186, %s187
      %p198 = scmp.eq.s32.totalorder %s26, 0
      %p199 = por %p197, %p198
      %p200 = scmp.ne.s32.totalorder %s186, %s187
      %p201 = scmp.eq.s32.totalorder %s27, 1
      %p202 = por %p200, %p201
      %p204 = scmp.ne.s32.totalorder %s187, %s203
      %p205 = scmp.eq.s32.totalorder %s27, 0
      %p206 = por %p204, %p205
      %p207 = scmp.le.s32.totalorder 1, %s21
      %p208 = scmp.lt.s32.totalorder %s21, 3
      %p209 = pnand %p207, %p208
      %p210 = pneg %p209
      // Predicated region
      $region9: #{tpu_custom_call.1} parent=5 // pred_check
        _
      $region10: #{tpu_custom_call.1} parent=5 // pred_check_branch
        %212 = sbr.rel (%p209) target = $region12
      $region11: #{tpu_custom_call.1} parent=5 // pred_region
        %s213 = ssub.s32 %s21, 1
        // Predicated region
        $region13: #{tpu_custom_call.1} parent=11 // pred_check
          %p214 = pneg %p42
        $region14: #{tpu_custom_call.1} parent=11 // pred_check_branch
          %216 = sbr.rel (%p214) target = $region16
        $region15: #{tpu_custom_call.1} parent=11 // pred_region
          %s218 = ssub.s32 512, 512
          %219 = vsyncadd [#allocation3], %s218
          %s220 = sshll.u32 [#allocation2], 4
          %s221 = int_to_ptr.vmem [resolvable:$true] %s220
          %226 = dma.hbm_to_vmem [thread:$0]  %s0, 512, %s221, [#allocation3], 64, 64, 4
        $region16: #{tpu_custom_call.1} parent=11 // pred_fallthru
          _
        // Predicated region
        $region17: #{tpu_custom_call.1} parent=11 // pred_check
          %p227 = pneg %p89
        $region18: #{tpu_custom_call.1} parent=11 // pred_check_branch
          %229 = sbr.rel (%p227) target = $region20
        $region19: #{tpu_custom_call.1} parent=11 // pred_region
          %s231 = ssub.s32 1024, 1024
          %232 = vsyncadd [#allocation6], %s231
          %s233 = sshll.u32 [#allocation7], 4
          %s234 = int_to_ptr.vmem [resolvable:$true] %s233
          %239 = dma.hbm_to_vmem [thread:$0]  %s2, 1024, %s234, [#allocation6], 64, 64, 4
        $region20: #{tpu_custom_call.1} parent=11 // pred_fallthru
          _
        // Predicated region
        $region21: #{tpu_custom_call.1} parent=11 // pred_check
          %p240 = pneg %p110
        $region22: #{tpu_custom_call.1} parent=11 // pred_check_branch
          %242 = sbr.rel (%p240) target = $region24
        $region23: #{tpu_custom_call.1} parent=11 // pred_region
          _
        $region24: #{tpu_custom_call.1} parent=11 // pred_fallthru
          _
        // Predicated region
        $region25: #{tpu_custom_call.1} parent=11 // pred_check
          %p243 = pneg %p131
        $region26: #{tpu_custom_call.1} parent=11 // pred_check_branch
          %245 = sbr.rel (%p243) target = $region28
        $region27: #{tpu_custom_call.1} parent=11 // pred_region
          %s247 = ssub.s32 3072, 3072
          %248 = vsyncadd [#allocation9], %s247
          %s249 = sshll.u32 [#allocation8], 4
          %s250 = int_to_ptr.vmem [resolvable:$true] %s249
          %255 = dma.hbm_to_vmem [thread:$0]  %s4, 3072, %s250, [#allocation9], 64, 64, 4
        $region28: #{tpu_custom_call.1} parent=11 // pred_fallthru
          _
        // Predicated region
        $region29: #{tpu_custom_call.1} parent=11 // pred_check
          %p256 = pneg %p152
        $region30: #{tpu_custom_call.1} parent=11 // pred_check_branch
          %258 = sbr.rel (%p256) target = $region32
        $region31: #{tpu_custom_call.1} parent=11 // pred_region
          %s260 = ssub.s32 1024, 1024
          %261 = vsyncadd [#allocation9], %s260
          %s262 = sshll.u32 [#allocation10], 4
          %s263 = int_to_ptr.vmem [resolvable:$true] %s262
          %268 = dma.hbm_to_vmem [thread:$0]  %s5, 1024, %s263, [#allocation9], 64, 64, 4
        $region32: #{tpu_custom_call.1} parent=11 // pred_fallthru
          _
        // Predicated region
        $region33: #{tpu_custom_call.1} parent=11 // pred_check
          %p269 = pneg %p173
        $region34: #{tpu_custom_call.1} parent=11 // pred_check_branch
          %271 = sbr.rel (%p269) target = $region36
        $region35: #{tpu_custom_call.1} parent=11 // pred_region
          _
        $region36: #{tpu_custom_call.1} parent=11 // pred_fallthru
          _
      $region12: #{tpu_custom_call.1} parent=5 // pred_fallthru
        _
      %p272 = scmp.lt.s32.totalorder %s21, 2
      // Predicated region
      $region37: #{tpu_custom_call.1} parent=5 // pred_check
        %p273 = pneg %p272
      $region38: #{tpu_custom_call.1} parent=5 // pred_check_branch
        %275 = sbr.rel (%p273) target = $region40
      $region39: #{tpu_custom_call.1} parent=5 // pred_region
        // Predicated region
        $region41: #{tpu_custom_call.1} parent=39 // pred_check
          %p276 = pneg %p62
        $region42: #{tpu_custom_call.1} parent=39 // pred_check_branch
          %278 = sbr.rel (%p276) target = $region44
        $region43: #{tpu_custom_call.1} parent=39 // pred_region
          %s279 = sand.u32 %s21, 1
          %s280 = scalar_lea.sflag [#allocation6], %s279
          %s281 = sand.u32 %s52, 1
          %s282 = smul.addr %s281, 32
          %s283 = scalar_lea.vmem [#allocation5], %s282
          %s285 = ssub.s32 512, 512
          %286 = vsyncadd %s280, %s285
          %s287 = smul.addr %s21, 8
          %s288 = smul.addr %s287, 64
          %s289 = scalar_lea.hbm %s1, %s288
          %s290 = sshll.u32 %s283, 4
          %s291 = int_to_ptr.vmem [resolvable:$true] %s290
          %296 = dma.hbm_to_vmem [thread:$0]  %s289, 512, %s291, %s280, 64, 64, 4
        $region44: #{tpu_custom_call.1} parent=39 // pred_fallthru
          _
      $region40: #{tpu_custom_call.1} parent=5 // pred_fallthru
        _
      %p297 = scmp.le.s32.totalorder 1, %s21
      %p298 = scmp.lt.s32.totalorder %s21, 3
      %p299 = pnand %p297, %p298
      %p300 = pneg %p299
      // Predicated region
      $region45: #{tpu_custom_call.1} parent=5 // pred_check
        _
      $region46: #{tpu_custom_call.1} parent=5 // pred_check_branch
        %302 = sbr.rel (%p299) target = $region48
      $region47: #{tpu_custom_call.1} parent=5 // pred_region
        %s303 = ssub.s32 %s21, 1
        // Predicated region
        $region49: #{tpu_custom_call.1} parent=47 // pred_check
          %p304 = pneg %p42
        $region50: #{tpu_custom_call.1} parent=47 // pred_check_branch
          %306 = sbr.rel (%p304) target = $region52
        $region51: #{tpu_custom_call.1} parent=47 // pred_region
          %307 = dma.done [#allocation3], 512
        $region52: #{tpu_custom_call.1} parent=47 // pred_fallthru
          _
        %s308 = sand.u32 %s26, 1
        %s309 = scalar_lea.sflag [#allocation6], %s308
        %s310 = sand.u32 %s55, 1
        %s311 = smul.addr %s310, 32
        %s312 = scalar_lea.vmem [#allocation5], %s311
        // Predicated region
        $region53: #{tpu_custom_call.1} parent=47 // pred_check
          %p313 = pneg %p68
        $region54: #{tpu_custom_call.1} parent=47 // pred_check_branch
          %315 = sbr.rel (%p313) target = $region56
        $region55: #{tpu_custom_call.1} parent=47 // pred_region
          %316 = dma.done %s309, 512
        $region56: #{tpu_custom_call.1} parent=47 // pred_fallthru
          _
        // Predicated region
        $region57: #{tpu_custom_call.1} parent=47 // pred_check
          %p317 = pneg %p89
        $region58: #{tpu_custom_call.1} parent=47 // pred_check_branch
          %319 = sbr.rel (%p317) target = $region60
        $region59: #{tpu_custom_call.1} parent=47 // pred_region
          %320 = dma.done [#allocation6], 1024
        $region60: #{tpu_custom_call.1} parent=47 // pred_fallthru
          _
        // Predicated region
        $region61: #{tpu_custom_call.1} parent=47 // pred_check
          %p321 = pneg %p131
        $region62: #{tpu_custom_call.1} parent=47 // pred_check_branch
          %323 = sbr.rel (%p321) target = $region64
        $region63: #{tpu_custom_call.1} parent=47 // pred_region
          %324 = dma.done [#allocation9], 3072
        $region64: #{tpu_custom_call.1} parent=47 // pred_fallthru
          _
        // Predicated region
        $region65: #{tpu_custom_call.1} parent=47 // pred_check
          %p325 = pneg %p152
        $region66: #{tpu_custom_call.1} parent=47 // pred_check_branch
          %327 = sbr.rel (%p325) target = $region68
        $region67: #{tpu_custom_call.1} parent=47 // pred_region
          %328 = dma.done [#allocation9], 1024
        $region68: #{tpu_custom_call.1} parent=47 // pred_fallthru
          _
        %p329 = pneg %p42
        %p330 = pneg %p39
        %s331 = sand.u32 %s26, 1
        %s332 = scalar_lea.sflag [#allocation6], %s331
        %s333 = sand.u32 %s55, 1
        %s334 = smul.addr %s333, 32
        %s335 = scalar_lea.vmem [#allocation5], %s334
        %p336 = pneg %p68
        %p337 = pneg %p65
        %p338 = pneg %p89
        %p339 = pneg %p86
        %p340 = pneg %p110
        %p341 = pneg %p107
        %p342 = pneg %p131
        %p343 = pneg %p128
        %p344 = pneg %p152
        %p345 = pneg %p149
        %p346 = pneg %p173
        %p347 = pneg %p170
        %p348 = pneg %p199
        %p349 = pneg %p196
        %s350 = sand.u32 %s186, 1
        %s351 = scalar_lea.sflag [#allocation4], %s350
        %s352 = sand.u32 %s186, 1
        %s353 = smul.addr %s352, 64
        %s354 = scalar_lea.vmem [#allocation11], %s353
        %v356 = vld [vmem:[%s312] sm:$0xf]
        %v357 = vld [vmem:[%s312 + $0x4] sm:$0xf]
        %v358 = vld [vmem:[%s312 + $0x8] sm:$0xf]
        %v359 = vld [vmem:[%s312 + $0xc] sm:$0xf]
        %v360 = vld [vmem:[%s312 + $0x10] sm:$0xf]
        %v361 = vld [vmem:[%s312 + $0x14] sm:$0xf]
        %v362 = vld [vmem:[%s312 + $0x18] sm:$0xf]
        %v363 = vld [vmem:[%s312 + $0x1c] sm:$0xf]
        %v364 = vld [vmem:[#allocation7] sm:$0xf]
        %v365 = vld [vmem:[#allocation7 + $0x4] sm:$0xf]
        %v366 = vld [vmem:[#allocation7 + $0x8] sm:$0xf]
        %v367 = vld [vmem:[#allocation7 + $0xc] sm:$0xf]
        %v368 = vld [vmem:[#allocation7 + $0x10] sm:$0xf]
        %v369 = vld [vmem:[#allocation7 + $0x14] sm:$0xf]
        %v370 = vld [vmem:[#allocation7 + $0x18] sm:$0xf]
        %v371 = vld [vmem:[#allocation7 + $0x1c] sm:$0xf]
        %v372 = vld [vmem:[#allocation7 + $0x20] sm:$0xf]
        %v373 = vld [vmem:[#allocation7 + $0x24] sm:$0xf]
        %v374 = vld [vmem:[#allocation7 + $0x28] sm:$0xf]
        %v375 = vld [vmem:[#allocation7 + $0x2c] sm:$0xf]
        %v376 = vld [vmem:[#allocation7 + $0x30] sm:$0xf]
        %v377 = vld [vmem:[#allocation7 + $0x34] sm:$0xf]
        %v378 = vld [vmem:[#allocation7 + $0x38] sm:$0xf]
        %v379 = vld [vmem:[#allocation7 + $0x3c] sm:$0xf]
        %v380 = vld [vmem:[%s3] sm:$0x1]
        %v382 = vlaneseq
        %v383 = vshrl.u32 %v382, 7
        %v384 = vsub.s32 0, %v383
        %v385 = vrot.slane %v380, %v384
        %v395 = vunpack.c.l.b16 %v356
        %v396 = vunpack.c.l.b16 %v357
        %v397 = vunpack.c.l.b16 %v358
        %v398 = vunpack.c.l.b16 %v359
        %v399 = vunpack.c.l.b16 %v360
        %v400 = vunpack.c.l.b16 %v361
        %v401 = vunpack.c.l.b16 %v362
        %v402 = vunpack.c.l.b16 %v363
        %v403 = vpack.c.b16 %v396, %v395
        %v404 = vpack.c.b16 %v398, %v397
        %v405 = vpack.c.b16 %v400, %v399
        %v406 = vpack.c.b16 %v402, %v401
        %v427 = vunpack.c.l.b16 %v364
        %v428 = vunpack.c.l.b16 %v365
        %v429 = vunpack.c.l.b16 %v366
        %v430 = vunpack.c.l.b16 %v367
        %v431 = vunpack.c.l.b16 %v368
        %v432 = vunpack.c.l.b16 %v369
        %v433 = vunpack.c.l.b16 %v370
        %v434 = vunpack.c.l.b16 %v371
        %v435 = vunpack.c.l.b16 %v372
        %v436 = vunpack.c.l.b16 %v373
        %v437 = vunpack.c.l.b16 %v374
        %v438 = vunpack.c.l.b16 %v375
        %v439 = vunpack.c.l.b16 %v376
        %v440 = vunpack.c.l.b16 %v377
        %v441 = vunpack.c.l.b16 %v378
        %v442 = vunpack.c.l.b16 %v379
        %v443 = vpack.c.b16 %v428, %v427
        %v444 = vpack.c.b16 %v430, %v429
        %v445 = vpack.c.b16 %v432, %v431
        %v446 = vpack.c.b16 %v434, %v433
        %v447 = vpack.c.b16 %v436, %v435
        %v448 = vpack.c.b16 %v438, %v437
        %v449 = vpack.c.b16 %v440, %v439
        %v450 = vpack.c.b16 %v442, %v441
        %459 = vmatprep.subr.bf16.mxu0 0
        %460 = vmatpush1.bf16.msra.mxu0 %v443
        %461 = vmatprep.subr.bf16.mxu0 0
        %462 = vmatpush1.bf16.msra.mxu0 %v444
        %463 = vmatprep.subr.bf16.mxu0 0
        %464 = vmatpush1.bf16.msra.mxu0 %v445
        %465 = vmatprep.subr.bf16.mxu0 0
        %466 = vmatpush1.bf16.msra.mxu0 %v446
        %467 = vmatprep.subr.bf16.mxu0 0
        %468 = vmatpush1.bf16.msra.mxu0 %v447
        %469 = vmatprep.subr.bf16.mxu0 0
        %470 = vmatpush1.bf16.msra.mxu0 %v448
        %471 = vmatprep.subr.bf16.mxu0 0
        %472 = vmatpush1.bf16.msra.mxu0 %v449
        %473 = vmatprep.subr.bf16.mxu0 0
        %474 = vmatpush1.bf16.msra.mxu0 %v450
        %475 = vmatprep.subr.bf16.mxu0 0
        %476 = vmatpush1.bf16.msra.mxu0 0
        %477 = vmatprep.subr.bf16.mxu0 0
        %478 = vmatpush1.bf16.msra.mxu0 0
        %479 = vmatprep.subr.bf16.mxu0 0
        %480 = vmatpush1.bf16.msra.mxu0 0
        %481 = vmatprep.subr.bf16.mxu0 0
        %482 = vmatpush1.bf16.msra.mxu0 0
        %483 = vmatprep.subr.bf16.mxu0 0
        %484 = vmatpush1.bf16.msra.mxu0 0
        %485 = vmatprep.subr.bf16.mxu0 0
        %486 = vmatpush1.bf16.msra.mxu0 0
        %487 = vmatprep.subr.bf16.mxu0 0
        %488 = vmatpush1.bf16.msra.mxu0 0
        %489 = vmatprep.subr.bf16.mxu0 0
        %490 = vmatpush1.bf16.msra.mxu0 0
        %491 = vmatprep.mubr.bf16.mxu0 0
        %492 = vmatmul.mubr.bf16.gmra.mrb[0].mxu0 %v403
        %v493 = vpop.f32.mrb[0].mxu0
        %v494 = vadd.f32 %v385, %v493
        %v495 = vpop.f32.mrb[0].mxu0
        %v496 = vpop.f32.mrb[0].mxu0
        %v497 = vadd.f32 %v385, %v496
        %v498 = vpop.f32.mrb[0].mxu0
        %499 = vmatprep.mubr.bf16.mxu0 0
        %500 = vmatmul.mubr.bf16.gmra.mrb[0].mxu0 %v404
        %v501 = vpop.f32.mrb[0].mxu0
        %v502 = vadd.f32 %v385, %v501
        %v503 = vpop.f32.mrb[0].mxu0
        %v504 = vpop.f32.mrb[0].mxu0
        %v505 = vadd.f32 %v385, %v504
        %v506 = vpop.f32.mrb[0].mxu0
        %507 = vmatprep.mubr.bf16.mxu0 0
        %508 = vmatmul.mubr.bf16.gmra.mrb[0].mxu0 %v405
        %v509 = vpop.f32.mrb[0].mxu0
        %v510 = vadd.f32 %v385, %v509
        %v511 = vpop.f32.mrb[0].mxu0
        %v512 = vpop.f32.mrb[0].mxu0
        %v513 = vadd.f32 %v385, %v512
        %v514 = vpop.f32.mrb[0].mxu0
        %515 = vmatprep.mubr.bf16.mxu0 0
        %516 = vmatmul.mubr.bf16.gmra.mrb[0].mxu0 %v406
        %v517 = vpop.f32.mrb[0].mxu0
        %v518 = vadd.f32 %v385, %v517
        %v519 = vpop.f32.mrb[0].mxu0
        %v520 = vpop.f32.mrb[0].mxu0
        %v521 = vadd.f32 %v385, %v520
        %v522 = vpop.f32.mrb[0].mxu0
        %523 = vdwg.mxu0
        %v524 = vmul.f32 %v494, 0.1
        %v525 = vmul.f32 %v497, 0.1
        %v526 = vmul.f32 %v502, 0.1
        %v527 = vmul.f32 %v505, 0.1
        %v528 = vmul.f32 %v510, 0.1
        %v529 = vmul.f32 %v513, 0.1
        %v530 = vmul.f32 %v518, 0.1
        %v531 = vmul.f32 %v521, 0.1
        %v532 = vld [vmem:[#allocation2] sm:$0xf]
        %v533 = vld [vmem:[#allocation2 + $0x4] sm:$0xf]
        %v534 = vld [vmem:[#allocation2 + $0x8] sm:$0xf]
        %v535 = vld [vmem:[#allocation2 + $0xc] sm:$0xf]
        %v536 = vld [vmem:[#allocation2 + $0x10] sm:$0xf]
        %v537 = vld [vmem:[#allocation2 + $0x14] sm:$0xf]
        %v538 = vld [vmem:[#allocation2 + $0x18] sm:$0xf]
        %v539 = vld [vmem:[#allocation2 + $0x1c] sm:$0xf]
        %v540 = vpack.c.bf16 %v497, %v494
        %v541 = vpack.c.bf16 %v505, %v502
        %v542 = vpack.c.bf16 %v513, %v510
        %v543 = vpack.c.bf16 %v521, %v518
        %v552 = vunpack.c.l.b16 %v532
        %v553 = vunpack.c.l.b16 %v533
        %v554 = vunpack.c.l.b16 %v534
        %v555 = vunpack.c.l.b16 %v535
        %v556 = vunpack.c.l.b16 %v536
        %v557 = vunpack.c.l.b16 %v537
        %v558 = vunpack.c.l.b16 %v538
        %v559 = vunpack.c.l.b16 %v539
        %v560 = vpack.c.b16 %v553, %v552
        %v561 = vpack.c.b16 %v555, %v554
        %v562 = vpack.c.b16 %v557, %v556
        %v563 = vpack.c.b16 %v559, %v558
        %vm564 = vcmask 523264
        %v566 = vsel %vm564, %v560, 0
        %v569 = vsel %vm564, %v561, 0
        %v572 = vsel %vm564, %v562, 0
        %v575 = vsel %vm564, %v563, 0
        %577 = vmatprep.subr.bf16.mxu0 0
        %578 = vmatpush1.bf16.msra.mxu0 %v540
        %579 = vmatprep.subr.bf16.mxu0 0
        %580 = vmatpush1.bf16.msra.mxu0 %v541
        %581 = vmatprep.subr.bf16.mxu0 0
        %582 = vmatpush1.bf16.msra.mxu0 %v542
        %583 = vmatprep.subr.bf16.mxu0 0
        %584 = vmatpush1.bf16.msra.mxu0 %v543
        %585 = vmatprep.subr.bf16.mxu0 0
        %586 = vmatpush1.bf16.msra.mxu0 0
        %587 = vmatprep.subr.bf16.mxu0 0
        %588 = vmatpush1.bf16.msra.mxu0 0
        %589 = vmatprep.subr.bf16.mxu0 0
        %590 = vmatpush1.bf16.msra.mxu0 0
        %591 = vmatprep.subr.bf16.mxu0 0
        %592 = vmatpush1.bf16.msra.mxu0 0
        %593 = vmatprep.subr.bf16.mxu0 0
        %594 = vmatpush1.bf16.msra.mxu0 0
        %595 = vmatprep.subr.bf16.mxu0 0
        %596 = vmatpush1.bf16.msra.mxu0 0
        %597 = vmatprep.subr.bf16.mxu0 0
        %598 = vmatpush1.bf16.msra.mxu0 0
        %599 = vmatprep.subr.bf16.mxu0 0
        %600 = vmatpush1.bf16.msra.mxu0 0
        %601 = vmatprep.subr.bf16.mxu0 0
        %602 = vmatpush1.bf16.msra.mxu0 0
        %603 = vmatprep.subr.bf16.mxu0 0
        %604 = vmatpush1.bf16.msra.mxu0 0
        %605 = vmatprep.subr.bf16.mxu0 0
        %606 = vmatpush1.bf16.msra.mxu0 0
        %607 = vmatprep.subr.bf16.mxu0 0
        %608 = vmatpush1.bf16.msra.mxu0 0
        %609 = vmatprep.mubr.bf16.mxu0 0
        %610 = vmatmul.mubr.bf16.gmra.mrb[0].mxu0 %v566
        %v611 = vpop.f32.mrb[0].mxu0
        %v612 = vadd.f32 %v524, %v611
        %v613 = vpop.f32.mrb[0].mxu0
        %v614 = vpop.f32.mrb[0].mxu0
        %v615 = vadd.f32 %v525, %v614
        %v616 = vpop.f32.mrb[0].mxu0
        %617 = vmatprep.mubr.bf16.mxu0 0
        %618 = vmatmul.mubr.bf16.gmra.mrb[0].mxu0 %v569
        %v619 = vpop.f32.mrb[0].mxu0
        %v620 = vadd.f32 %v526, %v619
        %v621 = vpop.f32.mrb[0].mxu0
        %v622 = vpop.f32.mrb[0].mxu0
        %v623 = vadd.f32 %v527, %v622
        %v624 = vpop.f32.mrb[0].mxu0
        %625 = vmatprep.mubr.bf16.mxu0 0
        %626 = vmatmul.mubr.bf16.gmra.mrb[0].mxu0 %v572
        %v627 = vpop.f32.mrb[0].mxu0
        %v628 = vadd.f32 %v528, %v627
        %v629 = vpop.f32.mrb[0].mxu0
        %v630 = vpop.f32.mrb[0].mxu0
        %v631 = vadd.f32 %v529, %v630
        %v632 = vpop.f32.mrb[0].mxu0
        %633 = vmatprep.mubr.bf16.mxu0 0
        %634 = vmatmul.mubr.bf16.gmra.mrb[0].mxu0 %v575
        %v635 = vpop.f32.mrb[0].mxu0
        %v636 = vadd.f32 %v530, %v635
        %v637 = vpop.f32.mrb[0].mxu0
        %v638 = vpop.f32.mrb[0].mxu0
        %v639 = vadd.f32 %v531, %v638
        %v640 = vpop.f32.mrb[0].mxu0
        %641 = vdwg.mxu0
        %v642 = vpack.c.bf16 %v615, %v612
        %v643 = vpack.c.bf16 %v623, %v620
        %v644 = vpack.c.bf16 %v631, %v628
        %v645 = vpack.c.bf16 %v639, %v636
        %v646 = vld [vmem:[#allocation8] sm:$0xf]
        %v647 = vld [vmem:[#allocation8 + $0x4] sm:$0xf]
        %v648 = vld [vmem:[#allocation8 + $0x8] sm:$0xf]
        %v649 = vld [vmem:[#allocation8 + $0xc] sm:$0xf]
        %v650 = vld [vmem:[#allocation8 + $0x10] sm:$0xf]
        %v651 = vld [vmem:[#allocation8 + $0x14] sm:$0xf]
        %v652 = vld [vmem:[#allocation8 + $0x18] sm:$0xf]
        %v653 = vld [vmem:[#allocation8 + $0x1c] sm:$0xf]
        %v654 = vld [vmem:[#allocation8 + $0x20] sm:$0xf]
        %v655 = vld [vmem:[#allocation8 + $0x24] sm:$0xf]
        %v656 = vld [vmem:[#allocation8 + $0x28] sm:$0xf]
        %v657 = vld [vmem:[#allocation8 + $0x2c] sm:$0xf]
        %v658 = vld [vmem:[#allocation8 + $0x30] sm:$0xf]
        %v659 = vld [vmem:[#allocation8 + $0x34] sm:$0xf]
        %v660 = vld [vmem:[#allocation8 + $0x38] sm:$0xf]
        %v661 = vld [vmem:[#allocation8 + $0x3c] sm:$0xf]
        %v678 = vunpack.c.l.b16 %v646
        %v679 = vunpack.c.l.b16 %v647
        %v680 = vunpack.c.l.b16 %v648
        %v681 = vunpack.c.l.b16 %v649
        %v682 = vunpack.c.l.b16 %v650
        %v683 = vunpack.c.l.b16 %v651
        %v684 = vunpack.c.l.b16 %v652
        %v685 = vunpack.c.l.b16 %v653
        %v686 = vunpack.c.l.b16 %v654
        %v687 = vunpack.c.l.b16 %v655
        %v688 = vunpack.c.l.b16 %v656
        %v689 = vunpack.c.l.b16 %v657
        %v690 = vunpack.c.l.b16 %v658
        %v691 = vunpack.c.l.b16 %v659
        %v692 = vunpack.c.l.b16 %v660
        %v693 = vunpack.c.l.b16 %v661
        %v694 = vpack.c.b16 %v679, %v678
        %v695 = vpack.c.b16 %v681, %v680
        %v696 = vpack.c.b16 %v683, %v682
        %v697 = vpack.c.b16 %v685, %v684
        %v698 = vpack.c.b16 %v687, %v686
        %v699 = vpack.c.b16 %v689, %v688
        %v700 = vpack.c.b16 %v691, %v690
        %v701 = vpack.c.b16 %v693, %v692
        %710 = vmatprep.subr.bf16.mxu0 0
        %711 = vmatpush1.bf16.msra.mxu0 %v694
        %712 = vmatprep.subr.bf16.mxu0 0
        %713 = vmatpush1.bf16.msra.mxu0 %v695
        %714 = vmatprep.subr.bf16.mxu0 0
        %715 = vmatpush1.bf16.msra.mxu0 %v696
        %716 = vmatprep.subr.bf16.mxu0 0
        %717 = vmatpush1.bf16.msra.mxu0 %v697
        %718 = vmatprep.subr.bf16.mxu0 0
        %719 = vmatpush1.bf16.msra.mxu0 %v698
        %720 = vmatprep.subr.bf16.mxu0 0
        %721 = vmatpush1.bf16.msra.mxu0 %v699
        %722 = vmatprep.subr.bf16.mxu0 0
        %723 = vmatpush1.bf16.msra.mxu0 %v700
        %724 = vmatprep.subr.bf16.mxu0 0
        %725 = vmatpush1.bf16.msra.mxu0 %v701
        %726 = vmatprep.subr.bf16.mxu0 0
        %727 = vmatpush1.bf16.msra.mxu0 0
        %728 = vmatprep.subr.bf16.mxu0 0
        %729 = vmatpush1.bf16.msra.mxu0 0
        %730 = vmatprep.subr.bf16.mxu0 0
        %731 = vmatpush1.bf16.msra.mxu0 0
        %732 = vmatprep.subr.bf16.mxu0 0
        %733 = vmatpush1.bf16.msra.mxu0 0
        %734 = vmatprep.subr.bf16.mxu0 0
        %735 = vmatpush1.bf16.msra.mxu0 0
        %736 = vmatprep.subr.bf16.mxu0 0
        %737 = vmatpush1.bf16.msra.mxu0 0
        %738 = vmatprep.subr.bf16.mxu0 0
        %739 = vmatpush1.bf16.msra.mxu0 0
        %740 = vmatprep.subr.bf16.mxu0 0
        %741 = vmatpush1.bf16.msra.mxu0 0
        %742 = vmatprep.mubr.bf16.mxu0 0
        %743 = vmatmul.mubr.bf16.gmra.mrb[0].mxu0 %v642
        %v744 = vpop.f32.mrb[0].mxu0
        %v745 = vadd.f32 0.0, %v744
        %v746 = vpop.f32.mrb[0].mxu0
        %v747 = vpop.f32.mrb[0].mxu0
        %v748 = vadd.f32 0.0, %v747
        %v749 = vpop.f32.mrb[0].mxu0
        %750 = vmatprep.mubr.bf16.mxu0 0
        %751 = vmatmul.mubr.bf16.gmra.mrb[0].mxu0 %v643
        %v752 = vpop.f32.mrb[0].mxu0
        %v753 = vadd.f32 0.0, %v752
        %v754 = vpop.f32.mrb[0].mxu0
        %v755 = vpop.f32.mrb[0].mxu0
        %v756 = vadd.f32 0.0, %v755
        %v757 = vpop.f32.mrb[0].mxu0
        %758 = vmatprep.mubr.bf16.mxu0 0
        %759 = vmatmul.mubr.bf16.gmra.mrb[0].mxu0 %v644
        %v760 = vpop.f32.mrb[0].mxu0
        %v761 = vadd.f32 0.0, %v760
        %v762 = vpop.f32.mrb[0].mxu0
        %v763 = vpop.f32.mrb[0].mxu0
        %v764 = vadd.f32 0.0, %v763
        %v765 = vpop.f32.mrb[0].mxu0
        %766 = vmatprep.mubr.bf16.mxu0 0
        %767 = vmatmul.mubr.bf16.gmra.mrb[0].mxu0 %v645
        %v768 = vpop.f32.mrb[0].mxu0
        %v769 = vadd.f32 0.0, %v768
        %v770 = vpop.f32.mrb[0].mxu0
        %v771 = vpop.f32.mrb[0].mxu0
        %v772 = vadd.f32 0.0, %v771
        %v773 = vpop.f32.mrb[0].mxu0
        %774 = vdwg.mxu0
        %v775 = vmax.f32 %v745, 0.0
        %v776 = vmax.f32 %v748, 0.0
        %v777 = vmax.f32 %v753, 0.0
        %v778 = vmax.f32 %v756, 0.0
        %v779 = vmax.f32 %v761, 0.0
        %v780 = vmax.f32 %v764, 0.0
        %v781 = vmax.f32 %v769, 0.0
        %v782 = vmax.f32 %v772, 0.0
        %v783 = vpack.c.bf16 %v776, %v775
        %v784 = vpack.c.bf16 %v778, %v777
        %v785 = vpack.c.bf16 %v780, %v779
        %v786 = vpack.c.bf16 %v782, %v781
        %787 = vmatprep.subr.bf16.mxu0 0
        %788 = vmatpush1.bf16.msra.mxu0 %v783
        %789 = vmatprep.subr.bf16.mxu0 0
        %790 = vmatpush1.bf16.msra.mxu0 %v784
        %791 = vmatprep.subr.bf16.mxu0 0
        %792 = vmatpush1.bf16.msra.mxu0 %v785
        %793 = vmatprep.subr.bf16.mxu0 0
        %794 = vmatpush1.bf16.msra.mxu0 %v786
        %795 = vmatprep.subr.bf16.mxu0 0
        %796 = vmatpush1.bf16.msra.mxu0 0
        %797 = vmatprep.subr.bf16.mxu0 0
        %798 = vmatpush1.bf16.msra.mxu0 0
        %799 = vmatprep.subr.bf16.mxu0 0
        %800 = vmatpush1.bf16.msra.mxu0 0
        %801 = vmatprep.subr.bf16.mxu0 0
        %802 = vmatpush1.bf16.msra.mxu0 0
        %803 = vmatprep.subr.bf16.mxu0 0
        %804 = vmatpush1.bf16.msra.mxu0 0
        %805 = vmatprep.subr.bf16.mxu0 0
        %806 = vmatpush1.bf16.msra.mxu0 0
        %807 = vmatprep.subr.bf16.mxu0 0
        %808 = vmatpush1.bf16.msra.mxu0 0
        %809 = vmatprep.subr.bf16.mxu0 0
        %810 = vmatpush1.bf16.msra.mxu0 0
        %811 = vmatprep.subr.bf16.mxu0 0
        %812 = vmatpush1.bf16.msra.mxu0 0
        %813 = vmatprep.subr.bf16.mxu0 0
        %814 = vmatpush1.bf16.msra.mxu0 0
        %815 = vmatprep.subr.bf16.mxu0 0
        %816 = vmatpush1.bf16.msra.mxu0 0
        %817 = vmatprep.subr.bf16.mxu0 0
        %818 = vmatpush1.bf16.msra.mxu0 0
        %819 = vmatprep.mubr.bf16.mxu0 0
        %820 = vmatmul.mubr.bf16.gmra.mrb[0].mxu0 %v566
        %v821 = vpop.f32.mrb[0].mxu0
        %v822 = vadd.f32 %v524, %v821
        %v823 = vpop.f32.mrb[0].mxu0
        %v824 = vpop.f32.mrb[0].mxu0
        %v825 = vadd.f32 %v525, %v824
        %v826 = vpop.f32.mrb[0].mxu0
        %827 = vmatprep.mubr.bf16.mxu0 0
        %828 = vmatmul.mubr.bf16.gmra.mrb[0].mxu0 %v569
        %v829 = vpop.f32.mrb[0].mxu0
        %v830 = vadd.f32 %v526, %v829
        %v831 = vpop.f32.mrb[0].mxu0
        %v832 = vpop.f32.mrb[0].mxu0
        %v833 = vadd.f32 %v527, %v832
        %v834 = vpop.f32.mrb[0].mxu0
        %835 = vmatprep.mubr.bf16.mxu0 0
        %836 = vmatmul.mubr.bf16.gmra.mrb[0].mxu0 %v572
        %v837 = vpop.f32.mrb[0].mxu0
        %v838 = vadd.f32 %v528, %v837
        %v839 = vpop.f32.mrb[0].mxu0
        %v840 = vpop.f32.mrb[0].mxu0
        %v841 = vadd.f32 %v529, %v840
        %v842 = vpop.f32.mrb[0].mxu0
        %843 = vmatprep.mubr.bf16.mxu0 0
        %844 = vmatmul.mubr.bf16.gmra.mrb[0].mxu0 %v575
        %v845 = vpop.f32.mrb[0].mxu0
        %v846 = vadd.f32 %v530, %v845
        %v847 = vpop.f32.mrb[0].mxu0
        %v848 = vpop.f32.mrb[0].mxu0
        %v849 = vadd.f32 %v531, %v848
        %v850 = vpop.f32.mrb[0].mxu0
        %851 = vdwg.mxu0
        %v852 = vpack.c.bf16 %v825, %v822
        %v853 = vpack.c.bf16 %v833, %v830
        %v854 = vpack.c.bf16 %v841, %v838
        %v855 = vpack.c.bf16 %v849, %v846
        %s856 = scalar_lea.vmem [#allocation8], 64
        %v857 = vld [vmem:[%s856] sm:$0xf]
        %v858 = vld [vmem:[%s856 + $0x4] sm:$0xf]
        %v859 = vld [vmem:[%s856 + $0x8] sm:$0xf]
        %v860 = vld [vmem:[%s856 + $0xc] sm:$0xf]
        %v861 = vld [vmem:[%s856 + $0x10] sm:$0xf]
        %v862 = vld [vmem:[%s856 + $0x14] sm:$0xf]
        %v863 = vld [vmem:[%s856 + $0x18] sm:$0xf]
        %v864 = vld [vmem:[%s856 + $0x1c] sm:$0xf]
        %v865 = vld [vmem:[%s856 + $0x20] sm:$0xf]
        %v866 = vld [vmem:[%s856 + $0x24] sm:$0xf]
        %v867 = vld [vmem:[%s856 + $0x28] sm:$0xf]
        %v868 = vld [vmem:[%s856 + $0x2c] sm:$0xf]
        %v869 = vld [vmem:[%s856 + $0x30] sm:$0xf]
        %v870 = vld [vmem:[%s856 + $0x34] sm:$0xf]
        %v871 = vld [vmem:[%s856 + $0x38] sm:$0xf]
        %v872 = vld [vmem:[%s856 + $0x3c] sm:$0xf]
        %v889 = vunpack.c.l.b16 %v857
        %v890 = vunpack.c.l.b16 %v858
        %v891 = vunpack.c.l.b16 %v859
        %v892 = vunpack.c.l.b16 %v860
        %v893 = vunpack.c.l.b16 %v861
        %v894 = vunpack.c.l.b16 %v862
        %v895 = vunpack.c.l.b16 %v863
        %v896 = vunpack.c.l.b16 %v864
        %v897 = vunpack.c.l.b16 %v865
        %v898 = vunpack.c.l.b16 %v866
        %v899 = vunpack.c.l.b16 %v867
        %v900 = vunpack.c.l.b16 %v868
        %v901 = vunpack.c.l.b16 %v869
        %v902 = vunpack.c.l.b16 %v870
        %v903 = vunpack.c.l.b16 %v871
        %v904 = vunpack.c.l.b16 %v872
        %v905 = vpack.c.b16 %v890, %v889
        %v906 = vpack.c.b16 %v892, %v891
        %v907 = vpack.c.b16 %v894, %v893
        %v908 = vpack.c.b16 %v896, %v895
        %v909 = vpack.c.b16 %v898, %v897
        %v910 = vpack.c.b16 %v900, %v899
        %v911 = vpack.c.b16 %v902, %v901
        %v912 = vpack.c.b16 %v904, %v903
        %921 = vmatprep.subr.bf16.mxu0 0
        %922 = vmatpush1.bf16.msra.mxu0 %v905
        %923 = vmatprep.subr.bf16.mxu0 0
        %924 = vmatpush1.bf16.msra.mxu0 %v906
        %925 = vmatprep.subr.bf16.mxu0 0
        %926 = vmatpush1.bf16.msra.mxu0 %v907
        %927 = vmatprep.subr.bf16.mxu0 0
        %928 = vmatpush1.bf16.msra.mxu0 %v908
        %929 = vmatprep.subr.bf16.mxu0 0
        %930 = vmatpush1.bf16.msra.mxu0 %v909
        %931 = vmatprep.subr.bf16.mxu0 0
        %932 = vmatpush1.bf16.msra.mxu0 %v910
        %933 = vmatprep.subr.bf16.mxu0 0
        %934 = vmatpush1.bf16.msra.mxu0 %v911
        %935 = vmatprep.subr.bf16.mxu0 0
        %936 = vmatpush1.bf16.msra.mxu0 %v912
        %937 = vmatprep.subr.bf16.mxu0 0
        %938 = vmatpush1.bf16.msra.mxu0 0
        %939 = vmatprep.subr.bf16.mxu0 0
        %940 = vmatpush1.bf16.msra.mxu0 0
        %941 = vmatprep.subr.bf16.mxu0 0
        %942 = vmatpush1.bf16.msra.mxu0 0
        %943 = vmatprep.subr.bf16.mxu0 0
        %944 = vmatpush1.bf16.msra.mxu0 0
        %945 = vmatprep.subr.bf16.mxu0 0
        %946 = vmatpush1.bf16.msra.mxu0 0
        %947 = vmatprep.subr.bf16.mxu0 0
        %948 = vmatpush1.bf16.msra.mxu0 0
        %949 = vmatprep.subr.bf16.mxu0 0
        %950 = vmatpush1.bf16.msra.mxu0 0
        %951 = vmatprep.subr.bf16.mxu0 0
        %952 = vmatpush1.bf16.msra.mxu0 0
        %953 = vmatprep.mubr.bf16.mxu0 0
        %954 = vmatmul.mubr.bf16.gmra.mrb[0].mxu0 %v852
        %v955 = vpop.f32.mrb[0].mxu0
        %v956 = vadd.f32 0.0, %v955
        %v957 = vpop.f32.mrb[0].mxu0
        %v958 = vpop.f32.mrb[0].mxu0
        %v959 = vadd.f32 0.0, %v958
        %v960 = vpop.f32.mrb[0].mxu0
        %961 = vmatprep.mubr.bf16.mxu0 0
        %962 = vmatmul.mubr.bf16.gmra.mrb[0].mxu0 %v853
        %v963 = vpop.f32.mrb[0].mxu0
        %v964 = vadd.f32 0.0, %v963
        %v965 = vpop.f32.mrb[0].mxu0
        %v966 = vpop.f32.mrb[0].mxu0
        %v967 = vadd.f32 0.0, %v966
        %v968 = vpop.f32.mrb[0].mxu0
        %969 = vmatprep.mubr.bf16.mxu0 0
        %970 = vmatmul.mubr.bf16.gmra.mrb[0].mxu0 %v854
        %v971 = vpop.f32.mrb[0].mxu0
        %v972 = vadd.f32 0.0, %v971
        %v973 = vpop.f32.mrb[0].mxu0
        %v974 = vpop.f32.mrb[0].mxu0
        %v975 = vadd.f32 0.0, %v974
        %v976 = vpop.f32.mrb[0].mxu0
        %977 = vmatprep.mubr.bf16.mxu0 0
        %978 = vmatmul.mubr.bf16.gmra.mrb[0].mxu0 %v855
        %v979 = vpop.f32.mrb[0].mxu0
        %v980 = vadd.f32 0.0, %v979
        %v981 = vpop.f32.mrb[0].mxu0
        %v982 = vpop.f32.mrb[0].mxu0
        %v983 = vadd.f32 0.0, %v982
        %v984 = vpop.f32.mrb[0].mxu0
        %985 = vdwg.mxu0
        %v986 = vmax.f32 %v956, 0.0
        %v987 = vmax.f32 %v959, 0.0
        %v988 = vmax.f32 %v964, 0.0
        %v989 = vmax.f32 %v967, 0.0
        %v990 = vmax.f32 %v972, 0.0
        %v991 = vmax.f32 %v975, 0.0
        %v992 = vmax.f32 %v980, 0.0
        %v993 = vmax.f32 %v983, 0.0
        %v994 = vpack.c.bf16 %v987, %v986
        %v995 = vpack.c.bf16 %v989, %v988
        %v996 = vpack.c.bf16 %v991, %v990
        %v997 = vpack.c.bf16 %v993, %v992
        %998 = vmatprep.subr.bf16.mxu0 0
        %999 = vmatpush1.bf16.msra.mxu0 %v994
        %1000 = vmatprep.subr.bf16.mxu0 0
        %1001 = vmatpush1.bf16.msra.mxu0 %v995
        %1002 = vmatprep.subr.bf16.mxu0 0
        %1003 = vmatpush1.bf16.msra.mxu0 %v996
        %1004 = vmatprep.subr.bf16.mxu0 0
        %1005 = vmatpush1.bf16.msra.mxu0 %v997
        %1006 = vmatprep.subr.bf16.mxu0 0
        %1007 = vmatpush1.bf16.msra.mxu0 0
        %1008 = vmatprep.subr.bf16.mxu0 0
        %1009 = vmatpush1.bf16.msra.mxu0 0
        %1010 = vmatprep.subr.bf16.mxu0 0
        %1011 = vmatpush1.bf16.msra.mxu0 0
        %1012 = vmatprep.subr.bf16.mxu0 0
        %1013 = vmatpush1.bf16.msra.mxu0 0
        %1014 = vmatprep.subr.bf16.mxu0 0
        %1015 = vmatpush1.bf16.msra.mxu0 0
        %1016 = vmatprep.subr.bf16.mxu0 0
        %1017 = vmatpush1.bf16.msra.mxu0 0
        %1018 = vmatprep.subr.bf16.mxu0 0
        %1019 = vmatpush1.bf16.msra.mxu0 0
        %1020 = vmatprep.subr.bf16.mxu0 0
        %1021 = vmatpush1.bf16.msra.mxu0 0
        %1022 = vmatprep.subr.bf16.mxu0 0
        %1023 = vmatpush1.bf16.msra.mxu0 0
        %1024 = vmatprep.subr.bf16.mxu0 0
        %1025 = vmatpush1.bf16.msra.mxu0 0
        %1026 = vmatprep.subr.bf16.mxu0 0
        %1027 = vmatpush1.bf16.msra.mxu0 0
        %1028 = vmatprep.subr.bf16.mxu0 0
        %1029 = vmatpush1.bf16.msra.mxu0 0
        %1030 = vmatprep.mubr.bf16.mxu0 0
        %1031 = vmatmul.mubr.bf16.gmra.mrb[0].mxu0 %v566
        %v1032 = vpop.f32.mrb[0].mxu0
        %v1033 = vadd.f32 %v524, %v1032
        %v1034 = vpop.f32.mrb[0].mxu0
        %v1035 = vpop.f32.mrb[0].mxu0
        %v1036 = vadd.f32 %v525, %v1035
        %v1037 = vpop.f32.mrb[0].mxu0
        %1038 = vmatprep.mubr.bf16.mxu0 0
        %1039 = vmatmul.mubr.bf16.gmra.mrb[0].mxu0 %v569
        %v1040 = vpop.f32.mrb[0].mxu0
        %v1041 = vadd.f32 %v526, %v1040
        %v1042 = vpop.f32.mrb[0].mxu0
        %v1043 = vpop.f32.mrb[0].mxu0
        %v1044 = vadd.f32 %v527, %v1043
        %v1045 = vpop.f32.mrb[0].mxu0
        %1046 = vmatprep.mubr.bf16.mxu0 0
        %1047 = vmatmul.mubr.bf16.gmra.mrb[0].mxu0 %v572
        %v1048 = vpop.f32.mrb[0].mxu0
        %v1049 = vadd.f32 %v528, %v1048
        %v1050 = vpop.f32.mrb[0].mxu0
        %v1051 = vpop.f32.mrb[0].mxu0
        %v1052 = vadd.f32 %v529, %v1051
        %v1053 = vpop.f32.mrb[0].mxu0
        %1054 = vmatprep.mubr.bf16.mxu0 0
        %1055 = vmatmul.mubr.bf16.gmra.mrb[0].mxu0 %v575
        %v1056 = vpop.f32.mrb[0].mxu0
        %v1057 = vadd.f32 %v530, %v1056
        %v1058 = vpop.f32.mrb[0].mxu0
        %v1059 = vpop.f32.mrb[0].mxu0
        %v1060 = vadd.f32 %v531, %v1059
        %v1061 = vpop.f32.mrb[0].mxu0
        %1062 = vdwg.mxu0
        %v1063 = vpack.c.bf16 %v1036, %v1033
        %v1064 = vpack.c.bf16 %v1044, %v1041
        %v1065 = vpack.c.bf16 %v1052, %v1049
        %v1066 = vpack.c.bf16 %v1060, %v1057
        %s1067 = scalar_lea.vmem [#allocation8], 128
        %v1068 = vld [vmem:[%s1067] sm:$0xf]
        %v1069 = vld [vmem:[%s1067 + $0x4] sm:$0xf]
        %v1070 = vld [vmem:[%s1067 + $0x8] sm:$0xf]
        %v1071 = vld [vmem:[%s1067 + $0xc] sm:$0xf]
        %v1072 = vld [vmem:[%s1067 + $0x10] sm:$0xf]
        %v1073 = vld [vmem:[%s1067 + $0x14] sm:$0xf]
        %v1074 = vld [vmem:[%s1067 + $0x18] sm:$0xf]
        %v1075 = vld [vmem:[%s1067 + $0x1c] sm:$0xf]
        %v1076 = vld [vmem:[%s1067 + $0x20] sm:$0xf]
        %v1077 = vld [vmem:[%s1067 + $0x24] sm:$0xf]
        %v1078 = vld [vmem:[%s1067 + $0x28] sm:$0xf]
        %v1079 = vld [vmem:[%s1067 + $0x2c] sm:$0xf]
        %v1080 = vld [vmem:[%s1067 + $0x30] sm:$0xf]
        %v1081 = vld [vmem:[%s1067 + $0x34] sm:$0xf]
        %v1082 = vld [vmem:[%s1067 + $0x38] sm:$0xf]
        %v1083 = vld [vmem:[%s1067 + $0x3c] sm:$0xf]
        %v1100 = vunpack.c.l.b16 %v1068
        %v1101 = vunpack.c.l.b16 %v1069
        %v1102 = vunpack.c.l.b16 %v1070
        %v1103 = vunpack.c.l.b16 %v1071
        %v1104 = vunpack.c.l.b16 %v1072
        %v1105 = vunpack.c.l.b16 %v1073
        %v1106 = vunpack.c.l.b16 %v1074
        %v1107 = vunpack.c.l.b16 %v1075
        %v1108 = vunpack.c.l.b16 %v1076
        %v1109 = vunpack.c.l.b16 %v1077
        %v1110 = vunpack.c.l.b16 %v1078
        %v1111 = vunpack.c.l.b16 %v1079
        %v1112 = vunpack.c.l.b16 %v1080
        %v1113 = vunpack.c.l.b16 %v1081
        %v1114 = vunpack.c.l.b16 %v1082
        %v1115 = vunpack.c.l.b16 %v1083
        %v1116 = vpack.c.b16 %v1101, %v1100
        %v1117 = vpack.c.b16 %v1103, %v1102
        %v1118 = vpack.c.b16 %v1105, %v1104
        %v1119 = vpack.c.b16 %v1107, %v1106
        %v1120 = vpack.c.b16 %v1109, %v1108
        %v1121 = vpack.c.b16 %v1111, %v1110
        %v1122 = vpack.c.b16 %v1113, %v1112
        %v1123 = vpack.c.b16 %v1115, %v1114
        %1132 = vmatprep.subr.bf16.mxu0 0
        %1133 = vmatpush1.bf16.msra.mxu0 %v1116
        %1134 = vmatprep.subr.bf16.mxu0 0
        %1135 = vmatpush1.bf16.msra.mxu0 %v1117
        %1136 = vmatprep.subr.bf16.mxu0 0
        %1137 = vmatpush1.bf16.msra.mxu0 %v1118
        %1138 = vmatprep.subr.bf16.mxu0 0
        %1139 = vmatpush1.bf16.msra.mxu0 %v1119
        %1140 = vmatprep.subr.bf16.mxu0 0
        %1141 = vmatpush1.bf16.msra.mxu0 %v1120
        %1142 = vmatprep.subr.bf16.mxu0 0
        %1143 = vmatpush1.bf16.msra.mxu0 %v1121
        %1144 = vmatprep.subr.bf16.mxu0 0
        %1145 = vmatpush1.bf16.msra.mxu0 %v1122
        %1146 = vmatprep.subr.bf16.mxu0 0
        %1147 = vmatpush1.bf16.msra.mxu0 %v1123
        %1148 = vmatprep.subr.bf16.mxu0 0
        %1149 = vmatpush1.bf16.msra.mxu0 0
        %1150 = vmatprep.subr.bf16.mxu0 0
        %1151 = vmatpush1.bf16.msra.mxu0 0
        %1152 = vmatprep.subr.bf16.mxu0 0
        %1153 = vmatpush1.bf16.msra.mxu0 0
        %1154 = vmatprep.subr.bf16.mxu0 0
        %1155 = vmatpush1.bf16.msra.mxu0 0
        %1156 = vmatprep.subr.bf16.mxu0 0
        %1157 = vmatpush1.bf16.msra.mxu0 0
        %1158 = vmatprep.subr.bf16.mxu0 0
        %1159 = vmatpush1.bf16.msra.mxu0 0
        %1160 = vmatprep.subr.bf16.mxu0 0
        %1161 = vmatpush1.bf16.msra.mxu0 0
        %1162 = vmatprep.subr.bf16.mxu0 0
        %1163 = vmatpush1.bf16.msra.mxu0 0
        %1164 = vmatprep.mubr.bf16.mxu0 0
        %1165 = vmatmul.mubr.bf16.gmra.mrb[0].mxu0 %v1063
        %v1166 = vpop.f32.mrb[0].mxu0
        %v1167 = vadd.f32 0.0, %v1166
        %v1168 = vpop.f32.mrb[0].mxu0
        %v1169 = vpop.f32.mrb[0].mxu0
        %v1170 = vadd.f32 0.0, %v1169
        %v1171 = vpop.f32.mrb[0].mxu0
        %1172 = vmatprep.mubr.bf16.mxu0 0
        %1173 = vmatmul.mubr.bf16.gmra.mrb[0].mxu0 %v1064
        %v1174 = vpop.f32.mrb[0].mxu0
        %v1175 = vadd.f32 0.0, %v1174
        %v1176 = vpop.f32.mrb[0].mxu0
        %v1177 = vpop.f32.mrb[0].mxu0
        %v1178 = vadd.f32 0.0, %v1177
        %v1179 = vpop.f32.mrb[0].mxu0
        %1180 = vmatprep.mubr.bf16.mxu0 0
        %1181 = vmatmul.mubr.bf16.gmra.mrb[0].mxu0 %v1065
        %v1182 = vpop.f32.mrb[0].mxu0
        %v1183 = vadd.f32 0.0, %v1182
        %v1184 = vpop.f32.mrb[0].mxu0
        %v1185 = vpop.f32.mrb[0].mxu0
        %v1186 = vadd.f32 0.0, %v1185
        %v1187 = vpop.f32.mrb[0].mxu0
        %1188 = vmatprep.mubr.bf16.mxu0 0
        %1189 = vmatmul.mubr.bf16.gmra.mrb[0].mxu0 %v1066
        %v1190 = vpop.f32.mrb[0].mxu0
        %v1191 = vadd.f32 0.0, %v1190
        %v1192 = vpop.f32.mrb[0].mxu0
        %v1193 = vpop.f32.mrb[0].mxu0
        %v1194 = vadd.f32 0.0, %v1193
        %v1195 = vpop.f32.mrb[0].mxu0
        %1196 = vdwg.mxu0
        %v1197 = vmax.f32 %v1167, 0.0
        %v1198 = vmax.f32 %v1170, 0.0
        %v1199 = vmax.f32 %v1175, 0.0
        %v1200 = vmax.f32 %v1178, 0.0
        %v1201 = vmax.f32 %v1183, 0.0
        %v1202 = vmax.f32 %v1186, 0.0
        %v1203 = vmax.f32 %v1191, 0.0
        %v1204 = vmax.f32 %v1194, 0.0
        %v1205 = vpack.c.bf16 %v1198, %v1197
        %v1206 = vpack.c.bf16 %v1200, %v1199
        %v1207 = vpack.c.bf16 %v1202, %v1201
        %v1208 = vpack.c.bf16 %v1204, %v1203
        %v1209 = vld [vmem:[#allocation10] sm:$0xf]
        %v1210 = vld [vmem:[#allocation10 + $0x4] sm:$0xf]
        %v1211 = vld [vmem:[#allocation10 + $0x8] sm:$0xf]
        %v1212 = vld [vmem:[#allocation10 + $0xc] sm:$0xf]
        %v1213 = vld [vmem:[#allocation10 + $0x10] sm:$0xf]
        %v1214 = vld [vmem:[#allocation10 + $0x14] sm:$0xf]
        %v1215 = vld [vmem:[#allocation10 + $0x18] sm:$0xf]
        %v1216 = vld [vmem:[#allocation10 + $0x1c] sm:$0xf]
        %v1217 = vld [vmem:[#allocation10 + $0x20] sm:$0xf]
        %v1218 = vld [vmem:[#allocation10 + $0x24] sm:$0xf]
        %v1219 = vld [vmem:[#allocation10 + $0x28] sm:$0xf]
        %v1220 = vld [vmem:[#allocation10 + $0x2c] sm:$0xf]
        %v1221 = vld [vmem:[#allocation10 + $0x30] sm:$0xf]
        %v1222 = vld [vmem:[#allocation10 + $0x34] sm:$0xf]
        %v1223 = vld [vmem:[#allocation10 + $0x38] sm:$0xf]
        %v1224 = vld [vmem:[#allocation10 + $0x3c] sm:$0xf]
        %v1225 = vld [vmem:[%s6] sm:$0x1]
        %v1227 = vlaneseq
        %v1228 = vshrl.u32 %v1227, 7
        %v1229 = vsub.s32 0, %v1228
        %v1230 = vrot.slane %v1225, %v1229
        %v1248 = vunpack.c.l.b16 %v1209
        %v1249 = vunpack.c.l.b16 %v1210
        %v1250 = vunpack.c.l.b16 %v1211
        %v1251 = vunpack.c.l.b16 %v1212
        %v1252 = vunpack.c.l.b16 %v1213
        %v1253 = vunpack.c.l.b16 %v1214
        %v1254 = vunpack.c.l.b16 %v1215
        %v1255 = vunpack.c.l.b16 %v1216
        %v1256 = vunpack.c.l.b16 %v1217
        %v1257 = vunpack.c.l.b16 %v1218
        %v1258 = vunpack.c.l.b16 %v1219
        %v1259 = vunpack.c.l.b16 %v1220
        %v1260 = vunpack.c.l.b16 %v1221
        %v1261 = vunpack.c.l.b16 %v1222
        %v1262 = vunpack.c.l.b16 %v1223
        %v1263 = vunpack.c.l.b16 %v1224
        %v1264 = vpack.c.b16 %v1249, %v1248
        %v1265 = vpack.c.b16 %v1251, %v1250
        %v1266 = vpack.c.b16 %v1253, %v1252
        %v1267 = vpack.c.b16 %v1255, %v1254
        %v1268 = vpack.c.b16 %v1257, %v1256
        %v1269 = vpack.c.b16 %v1259, %v1258
        %v1270 = vpack.c.b16 %v1261, %v1260
        %v1271 = vpack.c.b16 %v1263, %v1262
        %1280 = vmatprep.subr.bf16.mxu0 0
        %1281 = vmatpush1.bf16.msra.mxu0 %v1264
        %1282 = vmatprep.subr.bf16.mxu0 0
        %1283 = vmatpush1.bf16.msra.mxu0 %v1265
        %1284 = vmatprep.subr.bf16.mxu0 0
        %1285 = vmatpush1.bf16.msra.mxu0 %v1266
        %1286 = vmatprep.subr.bf16.mxu0 0
        %1287 = vmatpush1.bf16.msra.mxu0 %v1267
        %1288 = vmatprep.subr.bf16.mxu0 0
        %1289 = vmatpush1.bf16.msra.mxu0 %v1268
        %1290 = vmatprep.subr.bf16.mxu0 0
        %1291 = vmatpush1.bf16.msra.mxu0 %v1269
        %1292 = vmatprep.subr.bf16.mxu0 0
        %1293 = vmatpush1.bf16.msra.mxu0 %v1270
        %1294 = vmatprep.subr.bf16.mxu0 0
        %1295 = vmatpush1.bf16.msra.mxu0 %v1271
        %1296 = vmatprep.subr.bf16.mxu0 0
        %1297 = vmatpush1.bf16.msra.mxu0 0
        %1298 = vmatprep.subr.bf16.mxu0 0
        %1299 = vmatpush1.bf16.msra.mxu0 0
        %1300 = vmatprep.subr.bf16.mxu0 0
        %1301 = vmatpush1.bf16.msra.mxu0 0
        %1302 = vmatprep.subr.bf16.mxu0 0
        %1303 = vmatpush1.bf16.msra.mxu0 0
        %1304 = vmatprep.subr.bf16.mxu0 0
        %1305 = vmatpush1.bf16.msra.mxu0 0
        %1306 = vmatprep.subr.bf16.mxu0 0
        %1307 = vmatpush1.bf16.msra.mxu0 0
        %1308 = vmatprep.subr.bf16.mxu0 0
        %1309 = vmatpush1.bf16.msra.mxu0 0
        %1310 = vmatprep.subr.bf16.mxu0 0
        %1311 = vmatpush1.bf16.msra.mxu0 0
        %1312 = vmatprep.mubr.bf16.mxu0 0
        %1313 = vmatmul.mubr.bf16.gmra.mrb[0].mxu0 %v1205
        %v1314 = vpop.f32.mrb[0].mxu0
        %v1315 = vadd.f32 %v1230, %v1314
        %v1316 = vpop.f32.mrb[0].mxu0
        %v1317 = vpop.f32.mrb[0].mxu0
        %v1318 = vadd.f32 %v1230, %v1317
        %v1319 = vpop.f32.mrb[0].mxu0
        %1320 = vmatprep.mubr.bf16.mxu0 0
        %1321 = vmatmul.mubr.bf16.gmra.mrb[0].mxu0 %v1206
        %v1322 = vpop.f32.mrb[0].mxu0
        %v1323 = vadd.f32 %v1230, %v1322
        %v1324 = vpop.f32.mrb[0].mxu0
        %v1325 = vpop.f32.mrb[0].mxu0
        %v1326 = vadd.f32 %v1230, %v1325
        %v1327 = vpop.f32.mrb[0].mxu0
        %1328 = vmatprep.mubr.bf16.mxu0 0
        %1329 = vmatmul.mubr.bf16.gmra.mrb[0].mxu0 %v1207
        %v1330 = vpop.f32.mrb[0].mxu0
        %v1331 = vadd.f32 %v1230, %v1330
        %v1332 = vpop.f32.mrb[0].mxu0
        %v1333 = vpop.f32.mrb[0].mxu0
        %v1334 = vadd.f32 %v1230, %v1333
        %v1335 = vpop.f32.mrb[0].mxu0
        %1336 = vmatprep.mubr.bf16.mxu0 0
        %1337 = vmatmul.mubr.bf16.gmra.mrb[0].mxu0 %v1208
        %v1338 = vpop.f32.mrb[0].mxu0
        %v1339 = vadd.f32 %v1230, %v1338
        %v1340 = vpop.f32.mrb[0].mxu0
        %v1341 = vpop.f32.mrb[0].mxu0
        %v1342 = vadd.f32 %v1230, %v1341
        %v1343 = vpop.f32.mrb[0].mxu0
        %1344 = vdwg.mxu0
        %1345 = vst [vmem:[%s354] sm:$0xff] %v1315
        %1346 = vst [vmem:[%s354 + $0x8] sm:$0xff] %v1318
        %1347 = vst [vmem:[%s354 + $0x10] sm:$0xff] %v1323
        %1348 = vst [vmem:[%s354 + $0x18] sm:$0xff] %v1326
        %1349 = vst [vmem:[%s354 + $0x20] sm:$0xff] %v1331
        %1350 = vst [vmem:[%s354 + $0x28] sm:$0xff] %v1334
        %1351 = vst [vmem:[%s354 + $0x30] sm:$0xff] %v1339
        %1352 = vst [vmem:[%s354 + $0x38] sm:$0xff] %v1342
        %s1353 = sand.u32 %s186, 1
        %s1354 = scalar_lea.sflag [#allocation4], %s1353
        %s1355 = sand.u32 %s186, 1
        %s1356 = smul.addr %s1355, 64
        %s1357 = scalar_lea.vmem [#allocation11], %s1356
        // Predicated region
        $region69: #{tpu_custom_call.1} parent=47 // pred_check
          %p1358 = pneg %p196
        $region70: #{tpu_custom_call.1} parent=47 // pred_check_branch
          %1360 = sbr.rel (%p1358) target = $region72
        $region71: #{tpu_custom_call.1} parent=47 // pred_region
          %s1362 = ssub.s32 1024, 1024
          %1363 = vsyncadd %s1354, %s1362
          %s1364 = smul.addr %s26, 8
          %s1365 = smul.addr %s1364, 128
          %s1366 = scalar_lea.hbm %s7, %s1365
          %s1367 = sshll.u32 %s1357, 4
          %s1368 = int_to_ptr.vmem [resolvable:$true] %s1367
          %1373 = dma.vmem_to_hbm [thread:$0]  %s1368, 1024, %s1366, %s1354, 128, 128, 8
        $region72: #{tpu_custom_call.1} parent=47 // pred_fallthru
          _
      $region48: #{tpu_custom_call.1} parent=5 // pred_fallthru
        _
      %p1374 = scmp.le.s32.totalorder 2, %s21
      // Predicated region
      $region73: #{tpu_custom_call.1} parent=5 // pred_check
        %p1375 = pneg %p1374
      $region74: #{tpu_custom_call.1} parent=5 // pred_check_branch
        %1377 = sbr.rel (%p1375) target = $region76
      $region75: #{tpu_custom_call.1} parent=5 // pred_region
        %s1378 = ssub.s32 %s21, 2
        // Predicated region
        $region77: #{tpu_custom_call.1} parent=75 // pred_check
          %p1379 = pneg %p202
        $region78: #{tpu_custom_call.1} parent=75 // pred_check_branch
          %1381 = sbr.rel (%p1379) target = $region80
        $region79: #{tpu_custom_call.1} parent=75 // pred_region
          %s1382 = sand.u32 %s187, 1
          %s1383 = scalar_lea.sflag [#allocation4], %s1382
          %s1384 = sand.u32 %s187, 1
          %s1385 = smul.addr %s1384, 64
          %s1386 = scalar_lea.vmem [#allocation11], %s1385
          %1387 = dma.done %s1383, 1024
        $region80: #{tpu_custom_call.1} parent=75 // pred_fallthru
          _
      $region76: #{tpu_custom_call.1} parent=5 // pred_fallthru
        _
    $region6: #{tpu_custom_call.1} parent=1 // loop_footer
      %s25 = sadd.s32 1, %s21
    $region7: #{tpu_custom_call.1} parent=1 // loop_footer_branch
      %20 = sbr.rel target = $region3
    $region8: #{tpu_custom_call.1} parent=1 // loop_exit
      _
    %1388 = vsyncpa [#allocation3], 1
    %s1389 = scalar_lea.sflag [#allocation3], 1
    %1390 = vsyncpa %s1389, 1
    %1391 = vsyncpa [#allocation6], 1
    %s1392 = scalar_lea.sflag [#allocation6], 1
    %1393 = vsyncpa %s1392, 1
    %1394 = vsyncpa [#allocation9], 1
    %1395 = vsyncpa [#allocation4], 1
    %s1396 = scalar_lea.sflag [#allocation4], 1
    %1397 = vsyncpa %s1396, 1

</llo_original>
